<compile_context>
chip_gen: v5e
topology: v5e:2x2
jax: 0.10.0
libtpu: 0.0.40
codegen_flags: <defaults>
</compile_context>

<pallas_src>
import jax
import jax.numpy as jnp
from jax import lax
from jax.experimental import pallas as pl
from jax.experimental.pallas import tpu as pltpu

# ----------------------------- small config -----------------------------
NUM_ELEMENT  = 2
SIGMA_SIZE   = 3
FC_LIST      = [32, 32]
DROPOUT_PROB = [0.1, 0.1]          # identity in eval mode
NUM_WINDOWS  = 8                   # T
INPUT_LSTM   = 16                  # D (per-step LSTM input of layer 0)
HIDDEN_LSTM  = 16                  # H
NUM_LAYERS   = 2
BATCH        = 4
IN_DIM       = NUM_ELEMENT * SIGMA_SIZE * 5   # 30
BN_EPS       = 1e-5

assert len(FC_LIST) == 2 and NUM_LAYERS == 2, "fused kernel is specialized to this config"

_VMEM = pl.BlockSpec(memory_space=pltpu.MemorySpace.VMEM)


def _sigmoid(x):
    # logistic via tanh (used by the pure-JAX reference).
    return 0.5 * (jnp.tanh(0.5 * x) + 1.0)


# ------------------------------ fused kernel ------------------------------
def _svtnet_fused_kernel(x_ref, w0_ref, b0_ref, w1_ref, b1_ref,
                         wg0_ref, bg0_ref, whh0_ref,
                         wa1_ref, wb1_ref, bih1_ref, whh1_ref,
                         avec_ref, bvec_ref,
                         o_ref, h0_scr, h1_scr):
    T, H = NUM_WINDOWS, HIDDEN_LSTM
    S = 2 * H          # fused state width (32 lanes: [h_fwd | h_bwd])
    GW = 8 * H         # fused gate width  (128 lanes: [i_f i_b|f_f f_b|g_f g_b|o_f o_b])
    B = x_ref.shape[0]

    # Phase 1 — FC stack (BN folded into Linear): Linear -> ReLU (Dropout = identity).
    h = x_ref[...]
    h = jnp.maximum(
        jnp.dot(h, w0_ref[...], preferred_element_type=jnp.float32) + b0_ref[...], 0.0)
    h = jnp.maximum(
        jnp.dot(h, w1_ref[...], preferred_element_type=jnp.float32) + b1_ref[...], 0.0)

    # Phase 2 — ALL layer-0 fused gate inputs (both directions, all T windows) with a
    # single lane-dense (B,32)x(32,1024) matmul; create_seq(+BN) is pre-composed with
    # the layer-0 Wih host-side, with the fwd/bwd window pairing already merged.
    gin0_all = jnp.dot(h, wg0_ref[...], preferred_element_type=jnp.float32) + bg0_ref[...]

    a_vec = avec_ref[...]          # (1,128): 0.5 on i/f/o lanes, 1.0 on g lanes
    b_vec = bvec_ref[...]          # (1,128): 0.5 on i/f/o lanes, 0.0 on g lanes

    def fused_bilstm(gin, whh, out_scr):
        # Both directions in ONE fully-unrolled recurrence.  State = (B, 2H); Whh is
        # block-diagonal (2H, 8H); gates are one full 128-lane vreg.  Per serial step:
        # 1 MXU matmul + 1 dense tanh + 1 fma + cheap 32-lane elementwise updates.
        hs = jnp.zeros((B, S), jnp.float32)
        cs = jnp.zeros((B, S), jnp.float32)
        for s in range(T):
            gates = gin[s] + jnp.dot(hs, whh, preferred_element_type=jnp.float32)
            # sigmoid(z) = 0.5*tanh(0.5 z)+0.5 for i/f/o (0.5 pre-scale folded into
            # the weights host-side); tanh for g — one EUP pass over the whole vreg.
            act = jnp.tanh(gates) * a_vec + b_vec
            i = act[:, 0 * S:1 * S]
            f = act[:, 1 * S:2 * S]
            g = act[:, 2 * S:3 * S]
            o = act[:, 3 * S:4 * S]
            cs = f * cs + i * g
            hs = o * jnp.tanh(cs)
            out_scr[s * B:(s + 1) * B, :] = hs      # dense staging (off critical path)
        return out_scr[...]                         # (T*B, 2H)

    # Phase 3 — layer-0 fused bidirectional recurrence.
    gin0 = [gin0_all[:, s * GW:(s + 1) * GW] for s in range(T)]
    h0_all = fused_bilstm(gin0, whh0_ref[...], h0_scr)

    # Phase 4 — layer-1 input projection: 2 matmuls on the staged layer-0 outputs.
    # Row-block s of h0_all is [h0_fwd[window s] | h0_bwd[window T-1-s]].
    ga = jnp.dot(h0_all, wa1_ref[...], preferred_element_type=jnp.float32)   # (T*B,128)
    gb = jnp.dot(h0_all, wb1_ref[...], preferred_element_type=jnp.float32)   # (T*B,128)
    bih1 = bih1_ref[...]
    gin1 = [ga[s * B:(s + 1) * B, :] + gb[(T - 1 - s) * B:(T - s) * B, :] + bih1
            for s in range(T)]

    # Phase 5 — layer-1 fused bidirectional recurrence.
    h1_all = fused_bilstm(gin1, whh1_ref[...], h1_scr)

    # Phase 6 — mean over the 2H feature dim (== bilstm(x).mean(2)).
    # Two lane reductions over the staged slab; then write the (B, T) result.
    inv = jnp.float32(1.0 / S)
    sum_f = jnp.sum(h1_all[:, :H], axis=-1, keepdims=True)   # Σ h1_fwd[window s]
    sum_b = jnp.sum(h1_all[:, H:], axis=-1, keepdims=True)   # Σ h1_bwd[window T-1-s]
    for t in range(T):
        col = (sum_f[t * B:(t + 1) * B, :] + sum_b[(T - 1 - t) * B:(T - t) * B, :]) * inv
        o_ref[:, t:t + 1] = col.astype(o_ref.dtype)


def svtnet_dos_forward(x, fp):
    B = x.shape[0]
    inputs = (x,
              fp["fc"][0][0], fp["fc"][0][1],
              fp["fc"][1][0], fp["fc"][1][1],
              fp["wg0"], fp["bg0"], fp["whh0"],
              fp["wa1"], fp["wb1"], fp["bih1"], fp["whh1"],
              fp["a_vec"], fp["b_vec"])
    return pl.pallas_call(
        _svtnet_fused_kernel,
        out_shape=jax.ShapeDtypeStruct((B, NUM_WINDOWS), jnp.float32),
        in_specs=[_VMEM] * len(inputs),
        out_specs=_VMEM,
        scratch_shapes=[pltpu.VMEM((NUM_WINDOWS * B, 2 * HIDDEN_LSTM), jnp.float32),
                        pltpu.VMEM((NUM_WINDOWS * B, 2 * HIDDEN_LSTM), jnp.float32)],
    )(*inputs)


# --------------------- host-side parameter preparation ---------------------
def _fold_bn(w, b, gamma, beta, mean, var):
    s = gamma / jnp.sqrt(var + BN_EPS)                # (1, dout)
    return w * s, (b - mean) * s + beta


def _interleave_gates(wf, wb):
    """Merge per-direction gate blocks (..., 4H)+(...,4H) into the fused layout
    (..., 8H) = [i_f i_b | f_f f_b | g_f g_b | o_f o_b] (PyTorch gate order i,f,g,o)."""
    H = HIDDEN_LSTM
    sf = wf.reshape(wf.shape[:-1] + (4, H))
    sb = wb.reshape(wb.shape[:-1] + (4, H))
    return jnp.concatenate([sf, sb], axis=-1).reshape(wf.shape[:-1] + (8 * H,))


def _block_diag_whh(whh_f, whh_b):
    """(H,4H)+(H,4H) -> block-diagonal (2H,8H) in the fused gate layout:
    rows 0:H (h_fwd) feed the fwd half of each gate, rows H:2H feed the bwd half."""
    H = HIDDEN_LSTM
    z = jnp.zeros((H, H), jnp.float32)
    wf = whh_f.reshape(H, 4, H)
    wb = whh_b.reshape(H, 4, H)
    top = jnp.concatenate([jnp.concatenate([wf[:, g], z], axis=1) for g in range(4)], axis=1)
    bot = jnp.concatenate([jnp.concatenate([z, wb[:, g]], axis=1) for g in range(4)], axis=1)
    return jnp.concatenate([top, bot], axis=0)        # (2H, 8H)


def _layer1_input_weights(wih_f, wih_b, bias_f, bias_b):
    """Build W_A, W_B (each (2H,8H)) so that, with h0_all row-block s equal to
    [h0_fwd[s] | h0_bwd[T-1-s]], the fused layer-1 gate input at step s is
    h0_all[s] @ W_A + h0_all[T-1-s] @ W_B + bias."""
    H = HIDDEN_LSTM
    wf = wih_f.reshape(2 * H, 4, H)
    wb = wih_b.reshape(2 * H, 4, H)
    z = jnp.zeros((H, H), jnp.float32)
    wa_top = jnp.concatenate([jnp.concatenate([wf[:H, g], z], axis=1) for g in range(4)], axis=1)
    wa_bot = jnp.concatenate([jnp.concatenate([z, wb[H:, g]], axis=1) for g in range(4)], axis=1)
    wb_top = jnp.concatenate([jnp.concatenate([z, wb[:H, g]], axis=1) for g in range(4)], axis=1)
    wb_bot = jnp.concatenate([jnp.concatenate([wf[H:, g], z], axis=1) for g in range(4)], axis=1)
    W_A = jnp.concatenate([wa_top, wa_bot], axis=0)   # (2H, 8H)
    W_B = jnp.concatenate([wb_top, wb_bot], axis=0)   # (2H, 8H)
    bias = _interleave_gates(bias_f, bias_b)          # (1, 8H)
    return W_A, W_B, bias


def prepare_params(raw):
    """Fold eval-mode BN into Linear weights, pre-compose create_seq with the
    LSTM layer-0 input projection, fuse the two LSTM directions (block-diagonal
    Whh + gate-grouped column layout), and fold the sigmoid 0.5 pre-scale into
    the i/f/o columns (pure host-side linear algebra, all exact in f32)."""
    T, D, H, C = NUM_WINDOWS, INPUT_LSTM, HIDDEN_LSTM, FC_LIST[-1]

    fc = [_fold_bn(p["w"], p["b"], p["gamma"], p["beta"], p["mean"], p["var"])
          for p in raw["fc"]]

    cs = raw["create_seq"]
    wcs, bcs = _fold_bn(cs["w"], cs["b"], cs["gamma"], cs["beta"], cs["mean"], cs["var"])
    wcs_r = wcs.reshape(C, T, D)                      # per-window blocks of create_seq
    bcs_r = bcs.reshape(T, D)

    # Per-lane post-tanh affine and pre-activation scale for the fused gate layout.
    half = jnp.full((2 * H,), 0.5, jnp.float32)
    one = jnp.ones((2 * H,), jnp.float32)
    zero = jnp.zeros((2 * H,), jnp.float32)
    gate_scale = jnp.concatenate([half, half, one, half])          # folded into weights
    a_vec = jnp.concatenate([half, half, one, half])[None, :]      # (1, 8H)
    b_vec = jnp.concatenate([half, half, zero, half])[None, :]     # (1, 8H)

    # ---- layer 0: compose create_seq with Wih of both directions; pair fwd window s
    # with bwd window T-1-s (the fused recurrence step s). ----
    l0 = raw["lstm"][0]
    Wf = jnp.einsum("ctd,dg->tcg", wcs_r, l0["fwd"]["wih"])        # (T, C, 4H)
    Wb = jnp.einsum("ctd,dg->tcg", wcs_r, l0["bwd"]["wih"])
    Bf = bcs_r @ l0["fwd"]["wih"] + l0["fwd"]["bias"]              # (T, 4H)
    Bb = bcs_r @ l0["bwd"]["wih"] + l0["bwd"]["bias"]
    wg0 = _interleave_gates(Wf, Wb[::-1]) * gate_scale             # (T, C, 8H)
    bg0 = _interleave_gates(Bf, Bb[::-1]) * gate_scale             # (T, 8H)
    wg0_big = jnp.transpose(wg0, (1, 0, 2)).reshape(C, T * 8 * H)  # (32, 1024)
    bg0_big = bg0.reshape(1, T * 8 * H)                            # (1, 1024)

    whh0 = _block_diag_whh(l0["fwd"]["whh"], l0["bwd"]["whh"]) * gate_scale

    # ---- layer 1 ----
    l1 = raw["lstm"][1]
    wa1, wb1, bih1 = _layer1_input_weights(
        l1["fwd"]["wih"], l1["bwd"]["wih"], l1["fwd"]["bias"], l1["bwd"]["bias"])
    wa1 = wa1 * gate_scale
    wb1 = wb1 * gate_scale
    bih1 = bih1 * gate_scale
    whh1 = _block_diag_whh(l1["fwd"]["whh"], l1["bwd"]["whh"]) * gate_scale

    return dict(fc=fc, wg0=wg0_big, bg0=bg0_big, whh0=whh0,
                wa1=wa1, wb1=wb1, bih1=bih1, whh1=whh1,
                a_vec=a_vec, b_vec=b_vec)


# ------------------------ deterministic raw parameters ----------------------
def init_params(key):
    params = {"fc": [], "lstm": []}
    dims = [IN_DIM] + FC_LIST
    for i in range(len(FC_LIST)):
        key, k1, k2, k3, k4, k5, k6 = jax.random.split(key, 7)
        din, dout = dims[i], dims[i + 1]
        params["fc"].append(dict(
            w=jax.random.normal(k1, (din, dout), jnp.float32) * 0.1,
            b=jax.random.normal(k2, (1, dout), jnp.float32) * 0.01,
            gamma=1.0 + 0.1 * jax.random.normal(k3, (1, dout), jnp.float32),
            beta=0.01 * jax.random.normal(k4, (1, dout), jnp.float32),
            mean=0.05 * jax.random.normal(k5, (1, dout), jnp.float32),
            var=1.0 + 0.2 * jnp.abs(jax.random.normal(k6, (1, dout), jnp.float32)),
        ))

    key, k1, k2, k3, k4, k5, k6 = jax.random.split(key, 7)
    nsf = NUM_WINDOWS * INPUT_LSTM
    params["create_seq"] = dict(
        w=jax.random.normal(k1, (FC_LIST[-1], nsf), jnp.float32) * 0.1,
        b=jax.random.normal(k2, (1, nsf), jnp.float32) * 0.01,
        gamma=1.0 + 0.1 * jax.random.normal(k3, (1, nsf), jnp.float32),
        beta=0.01 * jax.random.normal(k4, (1, nsf), jnp.float32),
        mean=0.05 * jax.random.normal(k5, (1, nsf), jnp.float32),
        var=1.0 + 0.2 * jnp.abs(jax.random.normal(k6, (1, nsf), jnp.float32)),
    )

    d_in = INPUT_LSTM
    for _ in range(NUM_LAYERS):
        layer_p = {}
        for name in ("fwd", "bwd"):
            key, k1, k2, k3 = jax.random.split(key, 4)
            layer_p[name] = dict(
                wih=jax.random.normal(k1, (d_in, 4 * HIDDEN_LSTM), jnp.float32) * 0.1,
                whh=jax.random.normal(k2, (HIDDEN_LSTM, 4 * HIDDEN_LSTM), jnp.float32) * 0.1,
                # b_ih + b_hh folded into a single bias
                bias=jax.random.normal(k3, (1, 4 * HIDDEN_LSTM), jnp.float32) * 0.01,
            )
        params["lstm"].append(layer_p)
        d_in = 2 * HIDDEN_LSTM
    return params


# --------------------------- pure-JAX reference -----------------------------
def reference_forward(x, raw):
    """Non-Pallas reference implementing the original (eval-mode) module math."""
    hp = lax.Precision.HIGHEST
    H = HIDDEN_LSTM

    def bn(h, p):
        return (h - p["mean"]) / jnp.sqrt(p["var"] + BN_EPS) * p["gamma"] + p["beta"]

    h = x
    for p in raw["fc"]:
        h = jnp.dot(h, p["w"], precision=hp) + p["b"]
        h = jnp.maximum(bn(h, p), 0.0)                        # Dropout = identity (eval)
    cs = raw["create_seq"]
    h = bn(jnp.dot(h, cs["w"], precision=hp) + cs["b"], cs)
    seq = h.reshape(-1, NUM_WINDOWS, INPUT_LSTM)              # (B, T, D)

    for lp in raw["lstm"]:
        outs = []
        for name, reverse in (("fwd", False), ("bwd", True)):
            p = lp[name]
            hs = jnp.zeros((seq.shape[0], H), jnp.float32)
            cstate = jnp.zeros_like(hs)
            ys = [None] * NUM_WINDOWS
            order = range(NUM_WINDOWS - 1, -1, -1) if reverse else range(NUM_WINDOWS)
            for t in order:
                gates = (jnp.dot(seq[:, t], p["wih"], precision=hp)
                         + jnp.dot(hs, p["whh"], precision=hp) + p["bias"])
                i = _sigmoid(gates[:, 0 * H:1 * H])
                f = _sigmoid(gates[:, 1 * H:2 * H])
                g = jnp.tanh(gates[:, 2 * H:3 * H])
                o = _sigmoid(gates[:, 3 * H:4 * H])
                cstate = f * cstate + i * g
                hs = o * jnp.tanh(cstate)
                ys[t] = hs
            outs.append(jnp.stack(ys, axis=1))                # (B, T, H)
        seq = jnp.concatenate(outs, axis=-1)                  # (B, T, 2H)
    return seq.mean(axis=2)                                   # (B, T)


if __name__ == "__main__":
    key = jax.random.PRNGKey(0)
    key, kx = jax.random.split(key)
    x = jax.random.normal(kx, (BATCH, IN_DIM), jnp.float32)

    raw = init_params(key)
    fused_params = prepare_params(raw)

    out = svtnet_dos_forward(x, fused_params)
    out = jax.block_until_ready(out)

    assert out.shape == (BATCH, NUM_WINDOWS), out.shape
    assert bool(jnp.all(jnp.isfinite(out)))

    ref = jax.jit(reference_forward)(x, raw)
    err = float(jnp.max(jnp.abs(out - ref)))
    assert err < 1e-3, f"mismatch vs reference: {err}"

    print("KERNEL_OK")
</pallas_src>

<mosaic_0001>
module attributes {stable_mosaic.version = 11 : i64} {
  func.func @_svtnet_fused_kernel(%arg0: memref<4x30xf32, #tpu.memory_space<vmem>>, %arg1: memref<30x32xf32, #tpu.memory_space<vmem>>, %arg2: memref<1x32xf32, #tpu.memory_space<vmem>>, %arg3: memref<32x32xf32, #tpu.memory_space<vmem>>, %arg4: memref<1x32xf32, #tpu.memory_space<vmem>>, %arg5: memref<32x1024xf32, #tpu.memory_space<vmem>>, %arg6: memref<1x1024xf32, #tpu.memory_space<vmem>>, %arg7: memref<32x128xf32, #tpu.memory_space<vmem>>, %arg8: memref<32x128xf32, #tpu.memory_space<vmem>>, %arg9: memref<32x128xf32, #tpu.memory_space<vmem>>, %arg10: memref<1x128xf32, #tpu.memory_space<vmem>>, %arg11: memref<32x128xf32, #tpu.memory_space<vmem>>, %arg12: memref<1x128xf32, #tpu.memory_space<vmem>>, %arg13: memref<1x128xf32, #tpu.memory_space<vmem>>, %arg14: memref<4x8xf32, #tpu.memory_space<vmem>>, %arg15: memref<32x32xf32, #tpu.memory_space<vmem>>, %arg16: memref<32x32xf32, #tpu.memory_space<vmem>>) attributes {dimension_semantics = [], scalar_prefetch = 0 : i64, scratch_operands = 2 : i64, tpu.core_type = #tpu.core_type<tc>} {
    %c0 = arith.constant 0 : index
    %c0_0 = arith.constant 0 : index
    %0 = vector.load %arg0[%c0, %c0_0] : memref<4x30xf32, #tpu.memory_space<vmem>>, vector<4x30xf32>
    %c0_1 = arith.constant 0 : index
    %c0_2 = arith.constant 0 : index
    %1 = vector.load %arg1[%c0_1, %c0_2] : memref<30x32xf32, #tpu.memory_space<vmem>>, vector<30x32xf32>
    %cst = arith.constant dense<0.000000e+00> : vector<4x32xf32>
    %2 = tpu.matmul %0, %1, %cst {dimension_numbers = #tpu.dot_dimension_numbers<[1], [0], [0], [1], [0, 0, 1, 1], [], []>} : vector<4x30xf32>, vector<30x32xf32>, vector<4x32xf32> -> vector<4x32xf32>
    %c0_3 = arith.constant 0 : index
    %c0_4 = arith.constant 0 : index
    %3 = vector.load %arg2[%c0_3, %c0_4] : memref<1x32xf32, #tpu.memory_space<vmem>>, vector<1x32xf32>
    %4 = vector.broadcast %3 : vector<1x32xf32> to vector<4x32xf32>
    %5 = arith.addf %2, %4 : vector<4x32xf32>
    %cst_5 = arith.constant 0.000000e+00 : f32
    %6 = vector.broadcast %cst_5 : f32 to vector<4x32xf32>
    %7 = arith.maximumf %5, %6 : vector<4x32xf32>
    %c0_6 = arith.constant 0 : index
    %c0_7 = arith.constant 0 : index
    %8 = vector.load %arg3[%c0_6, %c0_7] : memref<32x32xf32, #tpu.memory_space<vmem>>, vector<32x32xf32>
    %cst_8 = arith.constant dense<0.000000e+00> : vector<4x32xf32>
    %9 = tpu.matmul %7, %8, %cst_8 {dimension_numbers = #tpu.dot_dimension_numbers<[1], [0], [0], [1], [0, 0, 1, 1], [], []>} : vector<4x32xf32>, vector<32x32xf32>, vector<4x32xf32> -> vector<4x32xf32>
    %c0_9 = arith.constant 0 : index
    %c0_10 = arith.constant 0 : index
    %10 = vector.load %arg4[%c0_9, %c0_10] : memref<1x32xf32, #tpu.memory_space<vmem>>, vector<1x32xf32>
    %11 = vector.broadcast %10 : vector<1x32xf32> to vector<4x32xf32>
    %12 = arith.addf %9, %11 : vector<4x32xf32>
    %cst_11 = arith.constant 0.000000e+00 : f32
    %13 = vector.broadcast %cst_11 : f32 to vector<4x32xf32>
    %14 = arith.maximumf %12, %13 : vector<4x32xf32>
    %c0_12 = arith.constant 0 : index
    %c0_13 = arith.constant 0 : index
    %15 = vector.load %arg5[%c0_12, %c0_13] : memref<32x1024xf32, #tpu.memory_space<vmem>>, vector<32x1024xf32>
    %cst_14 = arith.constant dense<0.000000e+00> : vector<4x1024xf32>
    %16 = tpu.matmul %14, %15, %cst_14 {dimension_numbers = #tpu.dot_dimension_numbers<[1], [0], [0], [1], [0, 0, 1, 1], [], []>} : vector<4x32xf32>, vector<32x1024xf32>, vector<4x1024xf32> -> vector<4x1024xf32>
    %c0_15 = arith.constant 0 : index
    %c0_16 = arith.constant 0 : index
    %17 = vector.load %arg6[%c0_15, %c0_16] : memref<1x1024xf32, #tpu.memory_space<vmem>>, vector<1x1024xf32>
    %18 = vector.broadcast %17 : vector<1x1024xf32> to vector<4x1024xf32>
    %19 = arith.addf %16, %18 : vector<4x1024xf32>
    %c0_17 = arith.constant 0 : index
    %c0_18 = arith.constant 0 : index
    %20 = vector.load %arg12[%c0_17, %c0_18] : memref<1x128xf32, #tpu.memory_space<vmem>>, vector<1x128xf32>
    %c0_19 = arith.constant 0 : index
    %c0_20 = arith.constant 0 : index
    %21 = vector.load %arg13[%c0_19, %c0_20] : memref<1x128xf32, #tpu.memory_space<vmem>>, vector<1x128xf32>
    %22 = vector.extract_strided_slice %19 {offsets = [0, 0], sizes = [4, 128], strides = [1, 1]} : vector<4x1024xf32> to vector<4x128xf32>
    %23 = vector.extract_strided_slice %19 {offsets = [0, 128], sizes = [4, 128], strides = [1, 1]} : vector<4x1024xf32> to vector<4x128xf32>
    %24 = vector.extract_strided_slice %19 {offsets = [0, 256], sizes = [4, 128], strides = [1, 1]} : vector<4x1024xf32> to vector<4x128xf32>
    %25 = vector.extract_strided_slice %19 {offsets = [0, 384], sizes = [4, 128], strides = [1, 1]} : vector<4x1024xf32> to vector<4x128xf32>
    %26 = vector.extract_strided_slice %19 {offsets = [0, 512], sizes = [4, 128], strides = [1, 1]} : vector<4x1024xf32> to vector<4x128xf32>
    %27 = vector.extract_strided_slice %19 {offsets = [0, 640], sizes = [4, 128], strides = [1, 1]} : vector<4x1024xf32> to vector<4x128xf32>
    %28 = vector.extract_strided_slice %19 {offsets = [0, 768], sizes = [4, 128], strides = [1, 1]} : vector<4x1024xf32> to vector<4x128xf32>
    %29 = vector.extract_strided_slice %19 {offsets = [0, 896], sizes = [4, 128], strides = [1, 1]} : vector<4x1024xf32> to vector<4x128xf32>
    %c0_21 = arith.constant 0 : index
    %c0_22 = arith.constant 0 : index
    %30 = vector.load %arg7[%c0_21, %c0_22] : memref<32x128xf32, #tpu.memory_space<vmem>>, vector<32x128xf32>
    %cst_23 = arith.constant 0.000000e+00 : f32
    %31 = vector.broadcast %cst_23 : f32 to vector<4x32xf32>
    %cst_24 = arith.constant 0.000000e+00 : f32
    %32 = vector.broadcast %cst_24 : f32 to vector<4x32xf32>
    %cst_25 = arith.constant dense<0.000000e+00> : vector<4x128xf32>
    %33 = tpu.matmul %31, %30, %cst_25 {dimension_numbers = #tpu.dot_dimension_numbers<[1], [0], [0], [1], [0, 0, 1, 1], [], []>} : vector<4x32xf32>, vector<32x128xf32>, vector<4x128xf32> -> vector<4x128xf32>
    %34 = arith.addf %22, %33 : vector<4x128xf32>
    %35 = math.tanh %34 : vector<4x128xf32>
    %36 = vector.broadcast %20 : vector<1x128xf32> to vector<4x128xf32>
    %37 = arith.mulf %35, %36 : vector<4x128xf32>
    %38 = vector.broadcast %21 : vector<1x128xf32> to vector<4x128xf32>
    %39 = arith.addf %37, %38 : vector<4x128xf32>
    %40 = vector.extract_strided_slice %39 {offsets = [0, 0], sizes = [4, 32], strides = [1, 1]} : vector<4x128xf32> to vector<4x32xf32>
    %41 = vector.extract_strided_slice %39 {offsets = [0, 32], sizes = [4, 32], strides = [1, 1]} : vector<4x128xf32> to vector<4x32xf32>
    %42 = vector.extract_strided_slice %39 {offsets = [0, 64], sizes = [4, 32], strides = [1, 1]} : vector<4x128xf32> to vector<4x32xf32>
    %43 = vector.extract_strided_slice %39 {offsets = [0, 96], sizes = [4, 32], strides = [1, 1]} : vector<4x128xf32> to vector<4x32xf32>
    %44 = arith.mulf %41, %32 : vector<4x32xf32>
    %45 = arith.mulf %40, %42 : vector<4x32xf32>
    %46 = arith.addf %44, %45 : vector<4x32xf32>
    %47 = math.tanh %46 : vector<4x32xf32>
    %48 = arith.mulf %43, %47 : vector<4x32xf32>
    %c0_26 = arith.constant 0 : index
    %c0_27 = arith.constant 0 : index
    %49 = vector.load %arg15[%c0_26, %c0_27] : memref<32x32xf32, #tpu.memory_space<vmem>>, vector<4x32xf32>
    tpu.vector_store %arg15[%c0_26, %c0_27], %48 {strides = array<i32>} : memref<32x32xf32, #tpu.memory_space<vmem>>, vector<4x32xf32>,
    %cst_28 = arith.constant dense<0.000000e+00> : vector<4x128xf32>
    %50 = tpu.matmul %48, %30, %cst_28 {dimension_numbers = #tpu.dot_dimension_numbers<[1], [0], [0], [1], [0, 0, 1, 1], [], []>} : vector<4x32xf32>, vector<32x128xf32>, vector<4x128xf32> -> vector<4x128xf32>
    %51 = arith.addf %23, %50 : vector<4x128xf32>
    %52 = math.tanh %51 : vector<4x128xf32>
    %53 = vector.broadcast %20 : vector<1x128xf32> to vector<4x128xf32>
    %54 = arith.mulf %52, %53 : vector<4x128xf32>
    %55 = vector.broadcast %21 : vector<1x128xf32> to vector<4x128xf32>
    %56 = arith.addf %54, %55 : vector<4x128xf32>
    %57 = vector.extract_strided_slice %56 {offsets = [0, 0], sizes = [4, 32], strides = [1, 1]} : vector<4x128xf32> to vector<4x32xf32>
    %58 = vector.extract_strided_slice %56 {offsets = [0, 32], sizes = [4, 32], strides = [1, 1]} : vector<4x128xf32> to vector<4x32xf32>
    %59 = vector.extract_strided_slice %56 {offsets = [0, 64], sizes = [4, 32], strides = [1, 1]} : vector<4x128xf32> to vector<4x32xf32>
    %60 = vector.extract_strided_slice %56 {offsets = [0, 96], sizes = [4, 32], strides = [1, 1]} : vector<4x128xf32> to vector<4x32xf32>
    %61 = arith.mulf %58, %46 : vector<4x32xf32>
    %62 = arith.mulf %57, %59 : vector<4x32xf32>
    %63 = arith.addf %61, %62 : vector<4x32xf32>
    %64 = math.tanh %63 : vector<4x32xf32>
    %65 = arith.mulf %60, %64 : vector<4x32xf32>
    %c4 = arith.constant 4 : index
    %c0_29 = arith.constant 0 : index
    %66 = vector.load %arg15[%c4, %c0_29] : memref<32x32xf32, #tpu.memory_space<vmem>>, vector<4x32xf32>
    tpu.vector_store %arg15[%c4, %c0_29], %65 {strides = array<i32>} : memref<32x32xf32, #tpu.memory_space<vmem>>, vector<4x32xf32>,
    %cst_30 = arith.constant dense<0.000000e+00> : vector<4x128xf32>
    %67 = tpu.matmul %65, %30, %cst_30 {dimension_numbers = #tpu.dot_dimension_numbers<[1], [0], [0], [1], [0, 0, 1, 1], [], []>} : vector<4x32xf32>, vector<32x128xf32>, vector<4x128xf32> -> vector<4x128xf32>
    %68 = arith.addf %24, %67 : vector<4x128xf32>
    %69 = math.tanh %68 : vector<4x128xf32>
    %70 = vector.broadcast %20 : vector<1x128xf32> to vector<4x128xf32>
    %71 = arith.mulf %69, %70 : vector<4x128xf32>
    %72 = vector.broadcast %21 : vector<1x128xf32> to vector<4x128xf32>
    %73 = arith.addf %71, %72 : vector<4x128xf32>
    %74 = vector.extract_strided_slice %73 {offsets = [0, 0], sizes = [4, 32], strides = [1, 1]} : vector<4x128xf32> to vector<4x32xf32>
    %75 = vector.extract_strided_slice %73 {offsets = [0, 32], sizes = [4, 32], strides = [1, 1]} : vector<4x128xf32> to vector<4x32xf32>
    %76 = vector.extract_strided_slice %73 {offsets = [0, 64], sizes = [4, 32], strides = [1, 1]} : vector<4x128xf32> to vector<4x32xf32>
    %77 = vector.extract_strided_slice %73 {offsets = [0, 96], sizes = [4, 32], strides = [1, 1]} : vector<4x128xf32> to vector<4x32xf32>
    %78 = arith.mulf %75, %63 : vector<4x32xf32>
    %79 = arith.mulf %74, %76 : vector<4x32xf32>
    %80 = arith.addf %78, %79 : vector<4x32xf32>
    %81 = math.tanh %80 : vector<4x32xf32>
    %82 = arith.mulf %77, %81 : vector<4x32xf32>
    %c8 = arith.constant 8 : index
    %c0_31 = arith.constant 0 : index
    %83 = vector.load %arg15[%c8, %c0_31] : memref<32x32xf32, #tpu.memory_space<vmem>>, vector<4x32xf32>
    tpu.vector_store %arg15[%c8, %c0_31], %82 {strides = array<i32>} : memref<32x32xf32, #tpu.memory_space<vmem>>, vector<4x32xf32>,
    %cst_32 = arith.constant dense<0.000000e+00> : vector<4x128xf32>
    %84 = tpu.matmul %82, %30, %cst_32 {dimension_numbers = #tpu.dot_dimension_numbers<[1], [0], [0], [1], [0, 0, 1, 1], [], []>} : vector<4x32xf32>, vector<32x128xf32>, vector<4x128xf32> -> vector<4x128xf32>
    %85 = arith.addf %25, %84 : vector<4x128xf32>
    %86 = math.tanh %85 : vector<4x128xf32>
    %87 = vector.broadcast %20 : vector<1x128xf32> to vector<4x128xf32>
    %88 = arith.mulf %86, %87 : vector<4x128xf32>
    %89 = vector.broadcast %21 : vector<1x128xf32> to vector<4x128xf32>
    %90 = arith.addf %88, %89 : vector<4x128xf32>
    %91 = vector.extract_strided_slice %90 {offsets = [0, 0], sizes = [4, 32], strides = [1, 1]} : vector<4x128xf32> to vector<4x32xf32>
    %92 = vector.extract_strided_slice %90 {offsets = [0, 32], sizes = [4, 32], strides = [1, 1]} : vector<4x128xf32> to vector<4x32xf32>
    %93 = vector.extract_strided_slice %90 {offsets = [0, 64], sizes = [4, 32], strides = [1, 1]} : vector<4x128xf32> to vector<4x32xf32>
    %94 = vector.extract_strided_slice %90 {offsets = [0, 96], sizes = [4, 32], strides = [1, 1]} : vector<4x128xf32> to vector<4x32xf32>
    %95 = arith.mulf %92, %80 : vector<4x32xf32>
    %96 = arith.mulf %91, %93 : vector<4x32xf32>
    %97 = arith.addf %95, %96 : vector<4x32xf32>
    %98 = math.tanh %97 : vector<4x32xf32>
    %99 = arith.mulf %94, %98 : vector<4x32xf32>
    %c12 = arith.constant 12 : index
    %c0_33 = arith.constant 0 : index
    %100 = vector.load %arg15[%c12, %c0_33] : memref<32x32xf32, #tpu.memory_space<vmem>>, vector<4x32xf32>
    tpu.vector_store %arg15[%c12, %c0_33], %99 {strides = array<i32>} : memref<32x32xf32, #tpu.memory_space<vmem>>, vector<4x32xf32>,
    %cst_34 = arith.constant dense<0.000000e+00> : vector<4x128xf32>
    %101 = tpu.matmul %99, %30, %cst_34 {dimension_numbers = #tpu.dot_dimension_numbers<[1], [0], [0], [1], [0, 0, 1, 1], [], []>} : vector<4x32xf32>, vector<32x128xf32>, vector<4x128xf32> -> vector<4x128xf32>
    %102 = arith.addf %26, %101 : vector<4x128xf32>
    %103 = math.tanh %102 : vector<4x128xf32>
    %104 = vector.broadcast %20 : vector<1x128xf32> to vector<4x128xf32>
    %105 = arith.mulf %103, %104 : vector<4x128xf32>
    %106 = vector.broadcast %21 : vector<1x128xf32> to vector<4x128xf32>
    %107 = arith.addf %105, %106 : vector<4x128xf32>
    %108 = vector.extract_strided_slice %107 {offsets = [0, 0], sizes = [4, 32], strides = [1, 1]} : vector<4x128xf32> to vector<4x32xf32>
    %109 = vector.extract_strided_slice %107 {offsets = [0, 32], sizes = [4, 32], strides = [1, 1]} : vector<4x128xf32> to vector<4x32xf32>
    %110 = vector.extract_strided_slice %107 {offsets = [0, 64], sizes = [4, 32], strides = [1, 1]} : vector<4x128xf32> to vector<4x32xf32>
    %111 = vector.extract_strided_slice %107 {offsets = [0, 96], sizes = [4, 32], strides = [1, 1]} : vector<4x128xf32> to vector<4x32xf32>
    %112 = arith.mulf %109, %97 : vector<4x32xf32>
    %113 = arith.mulf %108, %110 : vector<4x32xf32>
    %114 = arith.addf %112, %113 : vector<4x32xf32>
    %115 = math.tanh %114 : vector<4x32xf32>
    %116 = arith.mulf %111, %115 : vector<4x32xf32>
    %c16 = arith.constant 16 : index
    %c0_35 = arith.constant 0 : index
    %117 = vector.load %arg15[%c16, %c0_35] : memref<32x32xf32, #tpu.memory_space<vmem>>, vector<4x32xf32>
    tpu.vector_store %arg15[%c16, %c0_35], %116 {strides = array<i32>} : memref<32x32xf32, #tpu.memory_space<vmem>>, vector<4x32xf32>,
    %cst_36 = arith.constant dense<0.000000e+00> : vector<4x128xf32>
    %118 = tpu.matmul %116, %30, %cst_36 {dimension_numbers = #tpu.dot_dimension_numbers<[1], [0], [0], [1], [0, 0, 1, 1], [], []>} : vector<4x32xf32>, vector<32x128xf32>, vector<4x128xf32> -> vector<4x128xf32>
    %119 = arith.addf %27, %118 : vector<4x128xf32>
    %120 = math.tanh %119 : vector<4x128xf32>
    %121 = vector.broadcast %20 : vector<1x128xf32> to vector<4x128xf32>
    %122 = arith.mulf %120, %121 : vector<4x128xf32>
    %123 = vector.broadcast %21 : vector<1x128xf32> to vector<4x128xf32>
    %124 = arith.addf %122, %123 : vector<4x128xf32>
    %125 = vector.extract_strided_slice %124 {offsets = [0, 0], sizes = [4, 32], strides = [1, 1]} : vector<4x128xf32> to vector<4x32xf32>
    %126 = vector.extract_strided_slice %124 {offsets = [0, 32], sizes = [4, 32], strides = [1, 1]} : vector<4x128xf32> to vector<4x32xf32>
    %127 = vector.extract_strided_slice %124 {offsets = [0, 64], sizes = [4, 32], strides = [1, 1]} : vector<4x128xf32> to vector<4x32xf32>
    %128 = vector.extract_strided_slice %124 {offsets = [0, 96], sizes = [4, 32], strides = [1, 1]} : vector<4x128xf32> to vector<4x32xf32>
    %129 = arith.mulf %126, %114 : vector<4x32xf32>
    %130 = arith.mulf %125, %127 : vector<4x32xf32>
    %131 = arith.addf %129, %130 : vector<4x32xf32>
    %132 = math.tanh %131 : vector<4x32xf32>
    %133 = arith.mulf %128, %132 : vector<4x32xf32>
    %c20 = arith.constant 20 : index
    %c0_37 = arith.constant 0 : index
    %134 = vector.load %arg15[%c20, %c0_37] : memref<32x32xf32, #tpu.memory_space<vmem>>, vector<4x32xf32>
    tpu.vector_store %arg15[%c20, %c0_37], %133 {strides = array<i32>} : memref<32x32xf32, #tpu.memory_space<vmem>>, vector<4x32xf32>,
    %cst_38 = arith.constant dense<0.000000e+00> : vector<4x128xf32>
    %135 = tpu.matmul %133, %30, %cst_38 {dimension_numbers = #tpu.dot_dimension_numbers<[1], [0], [0], [1], [0, 0, 1, 1], [], []>} : vector<4x32xf32>, vector<32x128xf32>, vector<4x128xf32> -> vector<4x128xf32>
    %136 = arith.addf %28, %135 : vector<4x128xf32>
    %137 = math.tanh %136 : vector<4x128xf32>
    %138 = vector.broadcast %20 : vector<1x128xf32> to vector<4x128xf32>
    %139 = arith.mulf %137, %138 : vector<4x128xf32>
    %140 = vector.broadcast %21 : vector<1x128xf32> to vector<4x128xf32>
    %141 = arith.addf %139, %140 : vector<4x128xf32>
    %142 = vector.extract_strided_slice %141 {offsets = [0, 0], sizes = [4, 32], strides = [1, 1]} : vector<4x128xf32> to vector<4x32xf32>
    %143 = vector.extract_strided_slice %141 {offsets = [0, 32], sizes = [4, 32], strides = [1, 1]} : vector<4x128xf32> to vector<4x32xf32>
    %144 = vector.extract_strided_slice %141 {offsets = [0, 64], sizes = [4, 32], strides = [1, 1]} : vector<4x128xf32> to vector<4x32xf32>
    %145 = vector.extract_strided_slice %141 {offsets = [0, 96], sizes = [4, 32], strides = [1, 1]} : vector<4x128xf32> to vector<4x32xf32>
    %146 = arith.mulf %143, %131 : vector<4x32xf32>
    %147 = arith.mulf %142, %144 : vector<4x32xf32>
    %148 = arith.addf %146, %147 : vector<4x32xf32>
    %149 = math.tanh %148 : vector<4x32xf32>
    %150 = arith.mulf %145, %149 : vector<4x32xf32>
    %c24 = arith.constant 24 : index
    %c0_39 = arith.constant 0 : index
    %151 = vector.load %arg15[%c24, %c0_39] : memref<32x32xf32, #tpu.memory_space<vmem>>, vector<4x32xf32>
    tpu.vector_store %arg15[%c24, %c0_39], %150 {strides = array<i32>} : memref<32x32xf32, #tpu.memory_space<vmem>>, vector<4x32xf32>,
    %cst_40 = arith.constant dense<0.000000e+00> : vector<4x128xf32>
    %152 = tpu.matmul %150, %30, %cst_40 {dimension_numbers = #tpu.dot_dimension_numbers<[1], [0], [0], [1], [0, 0, 1, 1], [], []>} : vector<4x32xf32>, vector<32x128xf32>, vector<4x128xf32> -> vector<4x128xf32>
    %153 = arith.addf %29, %152 : vector<4x128xf32>
    %154 = math.tanh %153 : vector<4x128xf32>
    %155 = vector.broadcast %20 : vector<1x128xf32> to vector<4x128xf32>
    %156 = arith.mulf %154, %155 : vector<4x128xf32>
    %157 = vector.broadcast %21 : vector<1x128xf32> to vector<4x128xf32>
    %158 = arith.addf %156, %157 : vector<4x128xf32>
    %159 = vector.extract_strided_slice %158 {offsets = [0, 0], sizes = [4, 32], strides = [1, 1]} : vector<4x128xf32> to vector<4x32xf32>
    %160 = vector.extract_strided_slice %158 {offsets = [0, 32], sizes = [4, 32], strides = [1, 1]} : vector<4x128xf32> to vector<4x32xf32>
    %161 = vector.extract_strided_slice %158 {offsets = [0, 64], sizes = [4, 32], strides = [1, 1]} : vector<4x128xf32> to vector<4x32xf32>
    %162 = vector.extract_strided_slice %158 {offsets = [0, 96], sizes = [4, 32], strides = [1, 1]} : vector<4x128xf32> to vector<4x32xf32>
    %163 = arith.mulf %160, %148 : vector<4x32xf32>
    %164 = arith.mulf %159, %161 : vector<4x32xf32>
    %165 = arith.addf %163, %164 : vector<4x32xf32>
    %166 = math.tanh %165 : vector<4x32xf32>
    %167 = arith.mulf %162, %166 : vector<4x32xf32>
    %c28 = arith.constant 28 : index
    %c0_41 = arith.constant 0 : index
    %168 = vector.load %arg15[%c28, %c0_41] : memref<32x32xf32, #tpu.memory_space<vmem>>, vector<4x32xf32>
    tpu.vector_store %arg15[%c28, %c0_41], %167 {strides = array<i32>} : memref<32x32xf32, #tpu.memory_space<vmem>>, vector<4x32xf32>,
    %c0_42 = arith.constant 0 : index
    %c0_43 = arith.constant 0 : index
    %169 = vector.load %arg15[%c0_42, %c0_43] : memref<32x32xf32, #tpu.memory_space<vmem>>, vector<32x32xf32>
    %c0_44 = arith.constant 0 : index
    %c0_45 = arith.constant 0 : index
    %170 = vector.load %arg8[%c0_44, %c0_45] : memref<32x128xf32, #tpu.memory_space<vmem>>, vector<32x128xf32>
    %cst_46 = arith.constant dense<0.000000e+00> : vector<32x128xf32>
    %171 = tpu.matmul %169, %170, %cst_46 {dimension_numbers = #tpu.dot_dimension_numbers<[1], [0], [0], [1], [0, 0, 1, 1], [], []>} : vector<32x32xf32>, vector<32x128xf32>, vector<32x128xf32> -> vector<32x128xf32>
    %c0_47 = arith.constant 0 : index
    %c0_48 = arith.constant 0 : index
    %172 = vector.load %arg9[%c0_47, %c0_48] : memref<32x128xf32, #tpu.memory_space<vmem>>, vector<32x128xf32>
    %cst_49 = arith.constant dense<0.000000e+00> : vector<32x128xf32>
    %173 = tpu.matmul %169, %172, %cst_49 {dimension_numbers = #tpu.dot_dimension_numbers<[1], [0], [0], [1], [0, 0, 1, 1], [], []>} : vector<32x32xf32>, vector<32x128xf32>, vector<32x128xf32> -> vector<32x128xf32>
    %c0_50 = arith.constant 0 : index
    %c0_51 = arith.constant 0 : index
    %174 = vector.load %arg10[%c0_50, %c0_51] : memref<1x128xf32, #tpu.memory_space<vmem>>, vector<1x128xf32>
    %175 = vector.extract_strided_slice %171 {offsets = [0, 0], sizes = [4, 128], strides = [1, 1]} : vector<32x128xf32> to vector<4x128xf32>
    %176 = vector.extract_strided_slice %173 {offsets = [28, 0], sizes = [4, 128], strides = [1, 1]} : vector<32x128xf32> to vector<4x128xf32>
    %177 = arith.addf %175, %176 : vector<4x128xf32>
    %178 = vector.broadcast %174 : vector<1x128xf32> to vector<4x128xf32>
    %179 = arith.addf %177, %178 : vector<4x128xf32>
    %180 = vector.extract_strided_slice %171 {offsets = [4, 0], sizes = [4, 128], strides = [1, 1]} : vector<32x128xf32> to vector<4x128xf32>
    %181 = vector.extract_strided_slice %173 {offsets = [24, 0], sizes = [4, 128], strides = [1, 1]} : vector<32x128xf32> to vector<4x128xf32>
    %182 = arith.addf %180, %181 : vector<4x128xf32>
    %183 = vector.broadcast %174 : vector<1x128xf32> to vector<4x128xf32>
    %184 = arith.addf %182, %183 : vector<4x128xf32>
    %185 = vector.extract_strided_slice %171 {offsets = [8, 0], sizes = [4, 128], strides = [1, 1]} : vector<32x128xf32> to vector<4x128xf32>
    %186 = vector.extract_strided_slice %173 {offsets = [20, 0], sizes = [4, 128], strides = [1, 1]} : vector<32x128xf32> to vector<4x128xf32>
    %187 = arith.addf %185, %186 : vector<4x128xf32>
    %188 = vector.broadcast %174 : vector<1x128xf32> to vector<4x128xf32>
    %189 = arith.addf %187, %188 : vector<4x128xf32>
    %190 = vector.extract_strided_slice %171 {offsets = [12, 0], sizes = [4, 128], strides = [1, 1]} : vector<32x128xf32> to vector<4x128xf32>
    %191 = vector.extract_strided_slice %173 {offsets = [16, 0], sizes = [4, 128], strides = [1, 1]} : vector<32x128xf32> to vector<4x128xf32>
    %192 = arith.addf %190, %191 : vector<4x128xf32>
    %193 = vector.broadcast %174 : vector<1x128xf32> to vector<4x128xf32>
    %194 = arith.addf %192, %193 : vector<4x128xf32>
    %195 = vector.extract_strided_slice %171 {offsets = [16, 0], sizes = [4, 128], strides = [1, 1]} : vector<32x128xf32> to vector<4x128xf32>
    %196 = vector.extract_strided_slice %173 {offsets = [12, 0], sizes = [4, 128], strides = [1, 1]} : vector<32x128xf32> to vector<4x128xf32>
    %197 = arith.addf %195, %196 : vector<4x128xf32>
    %198 = vector.broadcast %174 : vector<1x128xf32> to vector<4x128xf32>
    %199 = arith.addf %197, %198 : vector<4x128xf32>
    %200 = vector.extract_strided_slice %171 {offsets = [20, 0], sizes = [4, 128], strides = [1, 1]} : vector<32x128xf32> to vector<4x128xf32>
    %201 = vector.extract_strided_slice %173 {offsets = [8, 0], sizes = [4, 128], strides = [1, 1]} : vector<32x128xf32> to vector<4x128xf32>
    %202 = arith.addf %200, %201 : vector<4x128xf32>
    %203 = vector.broadcast %174 : vector<1x128xf32> to vector<4x128xf32>
    %204 = arith.addf %202, %203 : vector<4x128xf32>
    %205 = vector.extract_strided_slice %171 {offsets = [24, 0], sizes = [4, 128], strides = [1, 1]} : vector<32x128xf32> to vector<4x128xf32>
    %206 = vector.extract_strided_slice %173 {offsets = [4, 0], sizes = [4, 128], strides = [1, 1]} : vector<32x128xf32> to vector<4x128xf32>
    %207 = arith.addf %205, %206 : vector<4x128xf32>
    %208 = vector.broadcast %174 : vector<1x128xf32> to vector<4x128xf32>
    %209 = arith.addf %207, %208 : vector<4x128xf32>
    %210 = vector.extract_strided_slice %171 {offsets = [28, 0], sizes = [4, 128], strides = [1, 1]} : vector<32x128xf32> to vector<4x128xf32>
    %211 = vector.extract_strided_slice %173 {offsets = [0, 0], sizes = [4, 128], strides = [1, 1]} : vector<32x128xf32> to vector<4x128xf32>
    %212 = arith.addf %210, %211 : vector<4x128xf32>
    %213 = vector.broadcast %174 : vector<1x128xf32> to vector<4x128xf32>
    %214 = arith.addf %212, %213 : vector<4x128xf32>
    %c0_52 = arith.constant 0 : index
    %c0_53 = arith.constant 0 : index
    %215 = vector.load %arg11[%c0_52, %c0_53] : memref<32x128xf32, #tpu.memory_space<vmem>>, vector<32x128xf32>
    %cst_54 = arith.constant 0.000000e+00 : f32
    %216 = vector.broadcast %cst_54 : f32 to vector<4x32xf32>
    %cst_55 = arith.constant 0.000000e+00 : f32
    %217 = vector.broadcast %cst_55 : f32 to vector<4x32xf32>
    %cst_56 = arith.constant dense<0.000000e+00> : vector<4x128xf32>
    %218 = tpu.matmul %216, %215, %cst_56 {dimension_numbers = #tpu.dot_dimension_numbers<[1], [0], [0], [1], [0, 0, 1, 1], [], []>} : vector<4x32xf32>, vector<32x128xf32>, vector<4x128xf32> -> vector<4x128xf32>
    %219 = arith.addf %179, %218 : vector<4x128xf32>
    %220 = math.tanh %219 : vector<4x128xf32>
    %221 = vector.broadcast %20 : vector<1x128xf32> to vector<4x128xf32>
    %222 = arith.mulf %220, %221 : vector<4x128xf32>
    %223 = vector.broadcast %21 : vector<1x128xf32> to vector<4x128xf32>
    %224 = arith.addf %222, %223 : vector<4x128xf32>
    %225 = vector.extract_strided_slice %224 {offsets = [0, 0], sizes = [4, 32], strides = [1, 1]} : vector<4x128xf32> to vector<4x32xf32>
    %226 = vector.extract_strided_slice %224 {offsets = [0, 32], sizes = [4, 32], strides = [1, 1]} : vector<4x128xf32> to vector<4x32xf32>
    %227 = vector.extract_strided_slice %224 {offsets = [0, 64], sizes = [4, 32], strides = [1, 1]} : vector<4x128xf32> to vector<4x32xf32>
    %228 = vector.extract_strided_slice %224 {offsets = [0, 96], sizes = [4, 32], strides = [1, 1]} : vector<4x128xf32> to vector<4x32xf32>
    %229 = arith.mulf %226, %217 : vector<4x32xf32>
    %230 = arith.mulf %225, %227 : vector<4x32xf32>
    %231 = arith.addf %229, %230 : vector<4x32xf32>
    %232 = math.tanh %231 : vector<4x32xf32>
    %233 = arith.mulf %228, %232 : vector<4x32xf32>
    %c0_57 = arith.constant 0 : index
    %c0_58 = arith.constant 0 : index
    %234 = vector.load %arg16[%c0_57, %c0_58] : memref<32x32xf32, #tpu.memory_space<vmem>>, vector<4x32xf32>
    tpu.vector_store %arg16[%c0_57, %c0_58], %233 {strides = array<i32>} : memref<32x32xf32, #tpu.memory_space<vmem>>, vector<4x32xf32>,
    %cst_59 = arith.constant dense<0.000000e+00> : vector<4x128xf32>
    %235 = tpu.matmul %233, %215, %cst_59 {dimension_numbers = #tpu.dot_dimension_numbers<[1], [0], [0], [1], [0, 0, 1, 1], [], []>} : vector<4x32xf32>, vector<32x128xf32>, vector<4x128xf32> -> vector<4x128xf32>
    %236 = arith.addf %184, %235 : vector<4x128xf32>
    %237 = math.tanh %236 : vector<4x128xf32>
    %238 = vector.broadcast %20 : vector<1x128xf32> to vector<4x128xf32>
    %239 = arith.mulf %237, %238 : vector<4x128xf32>
    %240 = vector.broadcast %21 : vector<1x128xf32> to vector<4x128xf32>
    %241 = arith.addf %239, %240 : vector<4x128xf32>
    %242 = vector.extract_strided_slice %241 {offsets = [0, 0], sizes = [4, 32], strides = [1, 1]} : vector<4x128xf32> to vector<4x32xf32>
    %243 = vector.extract_strided_slice %241 {offsets = [0, 32], sizes = [4, 32], strides = [1, 1]} : vector<4x128xf32> to vector<4x32xf32>
    %244 = vector.extract_strided_slice %241 {offsets = [0, 64], sizes = [4, 32], strides = [1, 1]} : vector<4x128xf32> to vector<4x32xf32>
    %245 = vector.extract_strided_slice %241 {offsets = [0, 96], sizes = [4, 32], strides = [1, 1]} : vector<4x128xf32> to vector<4x32xf32>
    %246 = arith.mulf %243, %231 : vector<4x32xf32>
    %247 = arith.mulf %242, %244 : vector<4x32xf32>
    %248 = arith.addf %246, %247 : vector<4x32xf32>
    %249 = math.tanh %248 : vector<4x32xf32>
    %250 = arith.mulf %245, %249 : vector<4x32xf32>
    %c4_60 = arith.constant 4 : index
    %c0_61 = arith.constant 0 : index
    %251 = vector.load %arg16[%c4_60, %c0_61] : memref<32x32xf32, #tpu.memory_space<vmem>>, vector<4x32xf32>
    tpu.vector_store %arg16[%c4_60, %c0_61], %250 {strides = array<i32>} : memref<32x32xf32, #tpu.memory_space<vmem>>, vector<4x32xf32>,
    %cst_62 = arith.constant dense<0.000000e+00> : vector<4x128xf32>
    %252 = tpu.matmul %250, %215, %cst_62 {dimension_numbers = #tpu.dot_dimension_numbers<[1], [0], [0], [1], [0, 0, 1, 1], [], []>} : vector<4x32xf32>, vector<32x128xf32>, vector<4x128xf32> -> vector<4x128xf32>
    %253 = arith.addf %189, %252 : vector<4x128xf32>
    %254 = math.tanh %253 : vector<4x128xf32>
    %255 = vector.broadcast %20 : vector<1x128xf32> to vector<4x128xf32>
    %256 = arith.mulf %254, %255 : vector<4x128xf32>
    %257 = vector.broadcast %21 : vector<1x128xf32> to vector<4x128xf32>
    %258 = arith.addf %256, %257 : vector<4x128xf32>
    %259 = vector.extract_strided_slice %258 {offsets = [0, 0], sizes = [4, 32], strides = [1, 1]} : vector<4x128xf32> to vector<4x32xf32>
    %260 = vector.extract_strided_slice %258 {offsets = [0, 32], sizes = [4, 32], strides = [1, 1]} : vector<4x128xf32> to vector<4x32xf32>
    %261 = vector.extract_strided_slice %258 {offsets = [0, 64], sizes = [4, 32], strides = [1, 1]} : vector<4x128xf32> to vector<4x32xf32>
    %262 = vector.extract_strided_slice %258 {offsets = [0, 96], sizes = [4, 32], strides = [1, 1]} : vector<4x128xf32> to vector<4x32xf32>
    %263 = arith.mulf %260, %248 : vector<4x32xf32>
    %264 = arith.mulf %259, %261 : vector<4x32xf32>
    %265 = arith.addf %263, %264 : vector<4x32xf32>
    %266 = math.tanh %265 : vector<4x32xf32>
    %267 = arith.mulf %262, %266 : vector<4x32xf32>
    %c8_63 = arith.constant 8 : index
    %c0_64 = arith.constant 0 : index
    %268 = vector.load %arg16[%c8_63, %c0_64] : memref<32x32xf32, #tpu.memory_space<vmem>>, vector<4x32xf32>
    tpu.vector_store %arg16[%c8_63, %c0_64], %267 {strides = array<i32>} : memref<32x32xf32, #tpu.memory_space<vmem>>, vector<4x32xf32>,
    %cst_65 = arith.constant dense<0.000000e+00> : vector<4x128xf32>
    %269 = tpu.matmul %267, %215, %cst_65 {dimension_numbers = #tpu.dot_dimension_numbers<[1], [0], [0], [1], [0, 0, 1, 1], [], []>} : vector<4x32xf32>, vector<32x128xf32>, vector<4x128xf32> -> vector<4x128xf32>
    %270 = arith.addf %194, %269 : vector<4x128xf32>
    %271 = math.tanh %270 : vector<4x128xf32>
    %272 = vector.broadcast %20 : vector<1x128xf32> to vector<4x128xf32>
    %273 = arith.mulf %271, %272 : vector<4x128xf32>
    %274 = vector.broadcast %21 : vector<1x128xf32> to vector<4x128xf32>
    %275 = arith.addf %273, %274 : vector<4x128xf32>
    %276 = vector.extract_strided_slice %275 {offsets = [0, 0], sizes = [4, 32], strides = [1, 1]} : vector<4x128xf32> to vector<4x32xf32>
    %277 = vector.extract_strided_slice %275 {offsets = [0, 32], sizes = [4, 32], strides = [1, 1]} : vector<4x128xf32> to vector<4x32xf32>
    %278 = vector.extract_strided_slice %275 {offsets = [0, 64], sizes = [4, 32], strides = [1, 1]} : vector<4x128xf32> to vector<4x32xf32>
    %279 = vector.extract_strided_slice %275 {offsets = [0, 96], sizes = [4, 32], strides = [1, 1]} : vector<4x128xf32> to vector<4x32xf32>
    %280 = arith.mulf %277, %265 : vector<4x32xf32>
    %281 = arith.mulf %276, %278 : vector<4x32xf32>
    %282 = arith.addf %280, %281 : vector<4x32xf32>
    %283 = math.tanh %282 : vector<4x32xf32>
    %284 = arith.mulf %279, %283 : vector<4x32xf32>
    %c12_66 = arith.constant 12 : index
    %c0_67 = arith.constant 0 : index
    %285 = vector.load %arg16[%c12_66, %c0_67] : memref<32x32xf32, #tpu.memory_space<vmem>>, vector<4x32xf32>
    tpu.vector_store %arg16[%c12_66, %c0_67], %284 {strides = array<i32>} : memref<32x32xf32, #tpu.memory_space<vmem>>, vector<4x32xf32>,
    %cst_68 = arith.constant dense<0.000000e+00> : vector<4x128xf32>
    %286 = tpu.matmul %284, %215, %cst_68 {dimension_numbers = #tpu.dot_dimension_numbers<[1], [0], [0], [1], [0, 0, 1, 1], [], []>} : vector<4x32xf32>, vector<32x128xf32>, vector<4x128xf32> -> vector<4x128xf32>
    %287 = arith.addf %199, %286 : vector<4x128xf32>
    %288 = math.tanh %287 : vector<4x128xf32>
    %289 = vector.broadcast %20 : vector<1x128xf32> to vector<4x128xf32>
    %290 = arith.mulf %288, %289 : vector<4x128xf32>
    %291 = vector.broadcast %21 : vector<1x128xf32> to vector<4x128xf32>
    %292 = arith.addf %290, %291 : vector<4x128xf32>
    %293 = vector.extract_strided_slice %292 {offsets = [0, 0], sizes = [4, 32], strides = [1, 1]} : vector<4x128xf32> to vector<4x32xf32>
    %294 = vector.extract_strided_slice %292 {offsets = [0, 32], sizes = [4, 32], strides = [1, 1]} : vector<4x128xf32> to vector<4x32xf32>
    %295 = vector.extract_strided_slice %292 {offsets = [0, 64], sizes = [4, 32], strides = [1, 1]} : vector<4x128xf32> to vector<4x32xf32>
    %296 = vector.extract_strided_slice %292 {offsets = [0, 96], sizes = [4, 32], strides = [1, 1]} : vector<4x128xf32> to vector<4x32xf32>
    %297 = arith.mulf %294, %282 : vector<4x32xf32>
    %298 = arith.mulf %293, %295 : vector<4x32xf32>
    %299 = arith.addf %297, %298 : vector<4x32xf32>
    %300 = math.tanh %299 : vector<4x32xf32>
    %301 = arith.mulf %296, %300 : vector<4x32xf32>
    %c16_69 = arith.constant 16 : index
    %c0_70 = arith.constant 0 : index
    %302 = vector.load %arg16[%c16_69, %c0_70] : memref<32x32xf32, #tpu.memory_space<vmem>>, vector<4x32xf32>
    tpu.vector_store %arg16[%c16_69, %c0_70], %301 {strides = array<i32>} : memref<32x32xf32, #tpu.memory_space<vmem>>, vector<4x32xf32>,
    %cst_71 = arith.constant dense<0.000000e+00> : vector<4x128xf32>
    %303 = tpu.matmul %301, %215, %cst_71 {dimension_numbers = #tpu.dot_dimension_numbers<[1], [0], [0], [1], [0, 0, 1, 1], [], []>} : vector<4x32xf32>, vector<32x128xf32>, vector<4x128xf32> -> vector<4x128xf32>
    %304 = arith.addf %204, %303 : vector<4x128xf32>
    %305 = math.tanh %304 : vector<4x128xf32>
    %306 = vector.broadcast %20 : vector<1x128xf32> to vector<4x128xf32>
    %307 = arith.mulf %305, %306 : vector<4x128xf32>
    %308 = vector.broadcast %21 : vector<1x128xf32> to vector<4x128xf32>
    %309 = arith.addf %307, %308 : vector<4x128xf32>
    %310 = vector.extract_strided_slice %309 {offsets = [0, 0], sizes = [4, 32], strides = [1, 1]} : vector<4x128xf32> to vector<4x32xf32>
    %311 = vector.extract_strided_slice %309 {offsets = [0, 32], sizes = [4, 32], strides = [1, 1]} : vector<4x128xf32> to vector<4x32xf32>
    %312 = vector.extract_strided_slice %309 {offsets = [0, 64], sizes = [4, 32], strides = [1, 1]} : vector<4x128xf32> to vector<4x32xf32>
    %313 = vector.extract_strided_slice %309 {offsets = [0, 96], sizes = [4, 32], strides = [1, 1]} : vector<4x128xf32> to vector<4x32xf32>
    %314 = arith.mulf %311, %299 : vector<4x32xf32>
    %315 = arith.mulf %310, %312 : vector<4x32xf32>
    %316 = arith.addf %314, %315 : vector<4x32xf32>
    %317 = math.tanh %316 : vector<4x32xf32>
    %318 = arith.mulf %313, %317 : vector<4x32xf32>
    %c20_72 = arith.constant 20 : index
    %c0_73 = arith.constant 0 : index
    %319 = vector.load %arg16[%c20_72, %c0_73] : memref<32x32xf32, #tpu.memory_space<vmem>>, vector<4x32xf32>
    tpu.vector_store %arg16[%c20_72, %c0_73], %318 {strides = array<i32>} : memref<32x32xf32, #tpu.memory_space<vmem>>, vector<4x32xf32>,
    %cst_74 = arith.constant dense<0.000000e+00> : vector<4x128xf32>
    %320 = tpu.matmul %318, %215, %cst_74 {dimension_numbers = #tpu.dot_dimension_numbers<[1], [0], [0], [1], [0, 0, 1, 1], [], []>} : vector<4x32xf32>, vector<32x128xf32>, vector<4x128xf32> -> vector<4x128xf32>
    %321 = arith.addf %209, %320 : vector<4x128xf32>
    %322 = math.tanh %321 : vector<4x128xf32>
    %323 = vector.broadcast %20 : vector<1x128xf32> to vector<4x128xf32>
    %324 = arith.mulf %322, %323 : vector<4x128xf32>
    %325 = vector.broadcast %21 : vector<1x128xf32> to vector<4x128xf32>
    %326 = arith.addf %324, %325 : vector<4x128xf32>
    %327 = vector.extract_strided_slice %326 {offsets = [0, 0], sizes = [4, 32], strides = [1, 1]} : vector<4x128xf32> to vector<4x32xf32>
    %328 = vector.extract_strided_slice %326 {offsets = [0, 32], sizes = [4, 32], strides = [1, 1]} : vector<4x128xf32> to vector<4x32xf32>
    %329 = vector.extract_strided_slice %326 {offsets = [0, 64], sizes = [4, 32], strides = [1, 1]} : vector<4x128xf32> to vector<4x32xf32>
    %330 = vector.extract_strided_slice %326 {offsets = [0, 96], sizes = [4, 32], strides = [1, 1]} : vector<4x128xf32> to vector<4x32xf32>
    %331 = arith.mulf %328, %316 : vector<4x32xf32>
    %332 = arith.mulf %327, %329 : vector<4x32xf32>
    %333 = arith.addf %331, %332 : vector<4x32xf32>
    %334 = math.tanh %333 : vector<4x32xf32>
    %335 = arith.mulf %330, %334 : vector<4x32xf32>
    %c24_75 = arith.constant 24 : index
    %c0_76 = arith.constant 0 : index
    %336 = vector.load %arg16[%c24_75, %c0_76] : memref<32x32xf32, #tpu.memory_space<vmem>>, vector<4x32xf32>
    tpu.vector_store %arg16[%c24_75, %c0_76], %335 {strides = array<i32>} : memref<32x32xf32, #tpu.memory_space<vmem>>, vector<4x32xf32>,
    %cst_77 = arith.constant dense<0.000000e+00> : vector<4x128xf32>
    %337 = tpu.matmul %335, %215, %cst_77 {dimension_numbers = #tpu.dot_dimension_numbers<[1], [0], [0], [1], [0, 0, 1, 1], [], []>} : vector<4x32xf32>, vector<32x128xf32>, vector<4x128xf32> -> vector<4x128xf32>
    %338 = arith.addf %214, %337 : vector<4x128xf32>
    %339 = math.tanh %338 : vector<4x128xf32>
    %340 = vector.broadcast %20 : vector<1x128xf32> to vector<4x128xf32>
    %341 = arith.mulf %339, %340 : vector<4x128xf32>
    %342 = vector.broadcast %21 : vector<1x128xf32> to vector<4x128xf32>
    %343 = arith.addf %341, %342 : vector<4x128xf32>
    %344 = vector.extract_strided_slice %343 {offsets = [0, 0], sizes = [4, 32], strides = [1, 1]} : vector<4x128xf32> to vector<4x32xf32>
    %345 = vector.extract_strided_slice %343 {offsets = [0, 32], sizes = [4, 32], strides = [1, 1]} : vector<4x128xf32> to vector<4x32xf32>
    %346 = vector.extract_strided_slice %343 {offsets = [0, 64], sizes = [4, 32], strides = [1, 1]} : vector<4x128xf32> to vector<4x32xf32>
    %347 = vector.extract_strided_slice %343 {offsets = [0, 96], sizes = [4, 32], strides = [1, 1]} : vector<4x128xf32> to vector<4x32xf32>
    %348 = arith.mulf %345, %333 : vector<4x32xf32>
    %349 = arith.mulf %344, %346 : vector<4x32xf32>
    %350 = arith.addf %348, %349 : vector<4x32xf32>
    %351 = math.tanh %350 : vector<4x32xf32>
    %352 = arith.mulf %347, %351 : vector<4x32xf32>
    %c28_78 = arith.constant 28 : index
    %c0_79 = arith.constant 0 : index
    %353 = vector.load %arg16[%c28_78, %c0_79] : memref<32x32xf32, #tpu.memory_space<vmem>>, vector<4x32xf32>
    tpu.vector_store %arg16[%c28_78, %c0_79], %352 {strides = array<i32>} : memref<32x32xf32, #tpu.memory_space<vmem>>, vector<4x32xf32>,
    %c0_80 = arith.constant 0 : index
    %c0_81 = arith.constant 0 : index
    %354 = vector.load %arg16[%c0_80, %c0_81] : memref<32x32xf32, #tpu.memory_space<vmem>>, vector<32x32xf32>
    %355 = vector.extract_strided_slice %354 {offsets = [0, 0], sizes = [32, 16], strides = [1, 1]} : vector<32x32xf32> to vector<32x16xf32>
    %cst_82 = arith.constant dense<0.000000e+00> : vector<32xf32>
    %356 = vector.multi_reduction <add>, %355, %cst_82 [1] : vector<32x16xf32> to vector<32xf32>
    %357 = vector.shape_cast %356 : vector<32xf32> to vector<32x1xf32>
    %358 = vector.extract_strided_slice %354 {offsets = [0, 16], sizes = [32, 16], strides = [1, 1]} : vector<32x32xf32> to vector<32x16xf32>
    %cst_83 = arith.constant dense<0.000000e+00> : vector<32xf32>
    %359 = vector.multi_reduction <add>, %358, %cst_83 [1] : vector<32x16xf32> to vector<32xf32>
    %360 = vector.shape_cast %359 : vector<32xf32> to vector<32x1xf32>
    %361 = vector.extract_strided_slice %357 {offsets = [0, 0], sizes = [4, 1], strides = [1, 1]} : vector<32x1xf32> to vector<4x1xf32>
    %362 = vector.extract_strided_slice %360 {offsets = [28, 0], sizes = [4, 1], strides = [1, 1]} : vector<32x1xf32> to vector<4x1xf32>
    %363 = arith.addf %361, %362 : vector<4x1xf32>
    %cst_84 = arith.constant 3.125000e-02 : f32
    %364 = vector.broadcast %cst_84 : f32 to vector<4x1xf32>
    %365 = arith.mulf %363, %364 : vector<4x1xf32>
    %c0_85 = arith.constant 0 : index
    %c0_86 = arith.constant 0 : index
    %366 = vector.load %arg14[%c0_85, %c0_86] : memref<4x8xf32, #tpu.memory_space<vmem>>, vector<4x1xf32>
    tpu.vector_store %arg14[%c0_85, %c0_86], %365 {strides = array<i32>} : memref<4x8xf32, #tpu.memory_space<vmem>>, vector<4x1xf32>,
    %367 = vector.extract_strided_slice %357 {offsets = [4, 0], sizes = [4, 1], strides = [1, 1]} : vector<32x1xf32> to vector<4x1xf32>
    %368 = vector.extract_strided_slice %360 {offsets = [24, 0], sizes = [4, 1], strides = [1, 1]} : vector<32x1xf32> to vector<4x1xf32>
    %369 = arith.addf %367, %368 : vector<4x1xf32>
    %cst_87 = arith.constant 3.125000e-02 : f32
    %370 = vector.broadcast %cst_87 : f32 to vector<4x1xf32>
    %371 = arith.mulf %369, %370 : vector<4x1xf32>
    %c0_88 = arith.constant 0 : index
    %c1 = arith.constant 1 : index
    %372 = vector.load %arg14[%c0_88, %c1] : memref<4x8xf32, #tpu.memory_space<vmem>>, vector<4x1xf32>
    tpu.vector_store %arg14[%c0_88, %c1], %371 {strides = array<i32>} : memref<4x8xf32, #tpu.memory_space<vmem>>, vector<4x1xf32>,
    %373 = vector.extract_strided_slice %357 {offsets = [8, 0], sizes = [4, 1], strides = [1, 1]} : vector<32x1xf32> to vector<4x1xf32>
    %374 = vector.extract_strided_slice %360 {offsets = [20, 0], sizes = [4, 1], strides = [1, 1]} : vector<32x1xf32> to vector<4x1xf32>
    %375 = arith.addf %373, %374 : vector<4x1xf32>
    %cst_89 = arith.constant 3.125000e-02 : f32
    %376 = vector.broadcast %cst_89 : f32 to vector<4x1xf32>
    %377 = arith.mulf %375, %376 : vector<4x1xf32>
    %c0_90 = arith.constant 0 : index
    %c2 = arith.constant 2 : index
    %378 = vector.load %arg14[%c0_90, %c2] : memref<4x8xf32, #tpu.memory_space<vmem>>, vector<4x1xf32>
    tpu.vector_store %arg14[%c0_90, %c2], %377 {strides = array<i32>} : memref<4x8xf32, #tpu.memory_space<vmem>>, vector<4x1xf32>,
    %379 = vector.extract_strided_slice %357 {offsets = [12, 0], sizes = [4, 1], strides = [1, 1]} : vector<32x1xf32> to vector<4x1xf32>
    %380 = vector.extract_strided_slice %360 {offsets = [16, 0], sizes = [4, 1], strides = [1, 1]} : vector<32x1xf32> to vector<4x1xf32>
    %381 = arith.addf %379, %380 : vector<4x1xf32>
    %cst_91 = arith.constant 3.125000e-02 : f32
    %382 = vector.broadcast %cst_91 : f32 to vector<4x1xf32>
    %383 = arith.mulf %381, %382 : vector<4x1xf32>
    %c0_92 = arith.constant 0 : index
    %c3 = arith.constant 3 : index
    %384 = vector.load %arg14[%c0_92, %c3] : memref<4x8xf32, #tpu.memory_space<vmem>>, vector<4x1xf32>
    tpu.vector_store %arg14[%c0_92, %c3], %383 {strides = array<i32>} : memref<4x8xf32, #tpu.memory_space<vmem>>, vector<4x1xf32>,
    %385 = vector.extract_strided_slice %357 {offsets = [16, 0], sizes = [4, 1], strides = [1, 1]} : vector<32x1xf32> to vector<4x1xf32>
    %386 = vector.extract_strided_slice %360 {offsets = [12, 0], sizes = [4, 1], strides = [1, 1]} : vector<32x1xf32> to vector<4x1xf32>
    %387 = arith.addf %385, %386 : vector<4x1xf32>
    %cst_93 = arith.constant 3.125000e-02 : f32
    %388 = vector.broadcast %cst_93 : f32 to vector<4x1xf32>
    %389 = arith.mulf %387, %388 : vector<4x1xf32>
    %c0_94 = arith.constant 0 : index
    %c4_95 = arith.constant 4 : index
    %390 = vector.load %arg14[%c0_94, %c4_95] : memref<4x8xf32, #tpu.memory_space<vmem>>, vector<4x1xf32>
    tpu.vector_store %arg14[%c0_94, %c4_95], %389 {strides = array<i32>} : memref<4x8xf32, #tpu.memory_space<vmem>>, vector<4x1xf32>,
    %391 = vector.extract_strided_slice %357 {offsets = [20, 0], sizes = [4, 1], strides = [1, 1]} : vector<32x1xf32> to vector<4x1xf32>
    %392 = vector.extract_strided_slice %360 {offsets = [8, 0], sizes = [4, 1], strides = [1, 1]} : vector<32x1xf32> to vector<4x1xf32>
    %393 = arith.addf %391, %392 : vector<4x1xf32>
    %cst_96 = arith.constant 3.125000e-02 : f32
    %394 = vector.broadcast %cst_96 : f32 to vector<4x1xf32>
    %395 = arith.mulf %393, %394 : vector<4x1xf32>
    %c0_97 = arith.constant 0 : index
    %c5 = arith.constant 5 : index
    %396 = vector.load %arg14[%c0_97, %c5] : memref<4x8xf32, #tpu.memory_space<vmem>>, vector<4x1xf32>
    tpu.vector_store %arg14[%c0_97, %c5], %395 {strides = array<i32>} : memref<4x8xf32, #tpu.memory_space<vmem>>, vector<4x1xf32>,
    %397 = vector.extract_strided_slice %357 {offsets = [24, 0], sizes = [4, 1], strides = [1, 1]} : vector<32x1xf32> to vector<4x1xf32>
    %398 = vector.extract_strided_slice %360 {offsets = [4, 0], sizes = [4, 1], strides = [1, 1]} : vector<32x1xf32> to vector<4x1xf32>
    %399 = arith.addf %397, %398 : vector<4x1xf32>
    %cst_98 = arith.constant 3.125000e-02 : f32
    %400 = vector.broadcast %cst_98 : f32 to vector<4x1xf32>
    %401 = arith.mulf %399, %400 : vector<4x1xf32>
    %c0_99 = arith.constant 0 : index
    %c6 = arith.constant 6 : index
    %402 = vector.load %arg14[%c0_99, %c6] : memref<4x8xf32, #tpu.memory_space<vmem>>, vector<4x1xf32>
    tpu.vector_store %arg14[%c0_99, %c6], %401 {strides = array<i32>} : memref<4x8xf32, #tpu.memory_space<vmem>>, vector<4x1xf32>,
    %403 = vector.extract_strided_slice %357 {offsets = [28, 0], sizes = [4, 1], strides = [1, 1]} : vector<32x1xf32> to vector<4x1xf32>
    %404 = vector.extract_strided_slice %360 {offsets = [0, 0], sizes = [4, 1], strides = [1, 1]} : vector<32x1xf32> to vector<4x1xf32>
    %405 = arith.addf %403, %404 : vector<4x1xf32>
    %cst_100 = arith.constant 3.125000e-02 : f32
    %406 = vector.broadcast %cst_100 : f32 to vector<4x1xf32>
    %407 = arith.mulf %405, %406 : vector<4x1xf32>
    %c0_101 = arith.constant 0 : index
    %c7 = arith.constant 7 : index
    %408 = vector.load %arg14[%c0_101, %c7] : memref<4x8xf32, #tpu.memory_space<vmem>>, vector<4x1xf32>
    tpu.vector_store %arg14[%c0_101, %c7], %407 {strides = array<i32>} : memref<4x8xf32, #tpu.memory_space<vmem>>, vector<4x1xf32>,
    return
  }
}

</mosaic_0001>

<llo_original>
// kernel: tpu_custom_call.1
$region0: #{tpu_custom_call.1}
  #allocation0 [shape = 'u32[]', space=smem, size = 0x4, offset = 0x4, fixed_abs, tag = 'smem constant byte address 0x4 - core index']
  #allocation1 [shape = 'u32[72,128]{1,0:T(1,128)}', space=vmem, size = 0x9000, scoped, tag = 'internal scratch']
  #allocation2 [shape = 'f32[32,32]{1,0:T(8,128)}', space=vmem, size = 0x4000, scoped, tag = 'scratch operand']
  #allocation3 [shape = 'f32[32,32]{1,0:T(8,128)}', space=vmem, size = 0x4000, scoped, tag = 'scratch operand']
  %s0 = inlined_call_operand.hbm [shape: f32[4,30], index: 0, kind: input, shape index: {}]
  %s1 = inlined_call_operand.hbm [shape: f32[30,32], index: 1, kind: input, shape index: {}]
  %s2 = inlined_call_operand.vmem [shape: f32[1,32], index: 2, kind: input, shape index: {}]
  %s3 = inlined_call_operand.hbm [shape: f32[32,32], index: 3, kind: input, shape index: {}]
  %s4 = inlined_call_operand.vmem [shape: f32[1,32], index: 4, kind: input, shape index: {}]
  %s5 = inlined_call_operand.hbm [shape: f32[32,1024], index: 5, kind: input, shape index: {}]
  %s6 = inlined_call_operand.hbm [shape: f32[1,1024], index: 6, kind: input, shape index: {}]
  %s7 = inlined_call_operand.hbm [shape: f32[32,128], index: 7, kind: input, shape index: {}]
  %s8 = inlined_call_operand.hbm [shape: f32[32,128], index: 8, kind: input, shape index: {}]
  %s9 = inlined_call_operand.hbm [shape: f32[32,128], index: 9, kind: input, shape index: {}]
  %s10 = inlined_call_operand.vmem [shape: f32[1,128], index: 10, kind: input, shape index: {}]
  %s11 = inlined_call_operand.hbm [shape: f32[32,128], index: 11, kind: input, shape index: {}]
  %s12 = inlined_call_operand.vmem [shape: f32[1,128], index: 12, kind: input, shape index: {}]
  %s13 = inlined_call_operand.vmem [shape: f32[1,128], index: 13, kind: input, shape index: {}]
  %s14 = inlined_call_operand.hbm [shape: f32[4,8], index: 14, kind: output, shape index: {}]
  %s15 = sld [smem:[#allocation0]]
  $region102: #{tpu_custom_call.1} parent=0
    _
  %s17 = ssub.s32 1, %s15
  %s18 = scalar_select 0, %s17, %s15
  $region1: #{tpu_custom_call.1} parent=0
    #allocation4 [shape = 'u8[2048]{0}', space=vmem, size = 0x800, scoped, tag = 'input window, operand 0, single buffered']
    #allocation5 [shape = 's32[1]{0}', space=sflag, size = 0x4, scoped, tag = 'scoped memory for tpu_custom_call.1']
    #allocation6 [shape = 's32[1]{0}', space=sflag, size = 0x4, scoped, tag = 'scoped memory for tpu_custom_call.1']
    #allocation7 [shape = 'u8[16384]{0}', space=vmem, size = 0x4000, scoped, tag = 'input window, operand 1, single buffered']
    #allocation8 [shape = 's32[1]{0}', space=sflag, size = 0x4, scoped, tag = 'scoped memory for tpu_custom_call.1']
    #allocation9 [shape = 'u8[16384]{0}', space=vmem, size = 0x4000, scoped, tag = 'input window, operand 3, single buffered']
    #allocation10 [shape = 'u8[131072]{0}', space=vmem, size = 0x20000, scoped, tag = 'input window, operand 5, single buffered']
    #allocation11 [shape = 's32[1]{0}', space=sflag, size = 0x4, scoped, tag = 'scoped memory for tpu_custom_call.1']
    #allocation12 [shape = 'u8[4096]{0}', space=vmem, size = 0x1000, scoped, tag = 'input window, operand 6, single buffered']
    #allocation13 [shape = 'u8[16384]{0}', space=vmem, size = 0x4000, scoped, tag = 'input window, operand 7, single buffered']
    #allocation14 [shape = 's32[1]{0}', space=sflag, size = 0x4, scoped, tag = 'scoped memory for tpu_custom_call.1']
    #allocation15 [shape = 'u8[16384]{0}', space=vmem, size = 0x4000, scoped, tag = 'input window, operand 8, single buffered']
    #allocation16 [shape = 'u8[16384]{0}', space=vmem, size = 0x4000, scoped, tag = 'input window, operand 9, single buffered']
    #allocation17 [shape = 's32[1]{0}', space=sflag, size = 0x4, scoped, tag = 'scoped memory for tpu_custom_call.1']
    #allocation18 [shape = 'u8[16384]{0}', space=vmem, size = 0x4000, scoped, tag = 'input window, operand 11, single buffered']
    #allocation19 [shape = 'u8[2048]{0}', space=vmem, size = 0x800, scoped, tag = 'output window, operand 0, single buffered']
    %19 = vsyncpa [#allocation5], 0
    %20 = vsyncpa [#allocation8], 0
    %21 = vsyncpa [#allocation11], 0
    %22 = vsyncpa [#allocation14], 0
    %23 = vsyncpa [#allocation17], 0
    %24 = vsyncpa [#allocation6], 0
    // Predicated region
    $region2: #{tpu_custom_call.1} parent=1 // pred_check
      _
    $region3: #{tpu_custom_call.1} parent=1 // pred_check_branch
      %26 = sbr.rel (0) target = $region5
    $region4: #{tpu_custom_call.1} parent=1 // pred_region
      %28 = vsyncadd [#allocation5], 0
      %s30 = sshll.u32 %s0, 4
      %s31 = int_to_ptr.hbm [resolvable:$true] %s30
      %s32 = sshll.u32 [#allocation4], 4
      %s33 = int_to_ptr.vmem [resolvable:$true] %s32
      %35 = dma.hbm_to_vmem [thread:$0]  %s31, 64, %s33, [#allocation5]
    $region5: #{tpu_custom_call.1} parent=1 // pred_fallthru
      _
    // Predicated region
    $region6: #{tpu_custom_call.1} parent=1 // pred_check
      _
    $region7: #{tpu_custom_call.1} parent=1 // pred_check_branch
      %37 = sbr.rel (0) target = $region9
    $region8: #{tpu_custom_call.1} parent=1 // pred_region
      %39 = vsyncadd [#allocation8], 0
      %s40 = sshll.u32 %s1, 4
      %s41 = int_to_ptr.hbm [resolvable:$true] %s40
      %s42 = sshll.u32 [#allocation7], 4
      %s43 = int_to_ptr.vmem [resolvable:$true] %s42
      %48 = dma.hbm_to_vmem [thread:$0]  %s41, 512, %s43, [#allocation8], 128, 128, 8
    $region9: #{tpu_custom_call.1} parent=1 // pred_fallthru
      _
    // Predicated region
    $region10: #{tpu_custom_call.1} parent=1 // pred_check
      _
    $region11: #{tpu_custom_call.1} parent=1 // pred_check_branch
      %50 = sbr.rel (0) target = $region13
    $region12: #{tpu_custom_call.1} parent=1 // pred_region
      _
    $region13: #{tpu_custom_call.1} parent=1 // pred_fallthru
      _
    // Predicated region
    $region14: #{tpu_custom_call.1} parent=1 // pred_check
      _
    $region15: #{tpu_custom_call.1} parent=1 // pred_check_branch
      %52 = sbr.rel (0) target = $region17
    $region16: #{tpu_custom_call.1} parent=1 // pred_region
      %54 = vsyncadd [#allocation8], 0
      %s55 = sshll.u32 %s3, 4
      %s56 = int_to_ptr.hbm [resolvable:$true] %s55
      %s57 = sshll.u32 [#allocation9], 4
      %s58 = int_to_ptr.vmem [resolvable:$true] %s57
      %63 = dma.hbm_to_vmem [thread:$0]  %s56, 512, %s58, [#allocation8], 128, 128, 8
    $region17: #{tpu_custom_call.1} parent=1 // pred_fallthru
      _
    // Predicated region
    $region18: #{tpu_custom_call.1} parent=1 // pred_check
      _
    $region19: #{tpu_custom_call.1} parent=1 // pred_check_branch
      %65 = sbr.rel (0) target = $region21
    $region20: #{tpu_custom_call.1} parent=1 // pred_region
      _
    $region21: #{tpu_custom_call.1} parent=1 // pred_fallthru
      _
    // Predicated region
    $region22: #{tpu_custom_call.1} parent=1 // pred_check
      _
    $region23: #{tpu_custom_call.1} parent=1 // pred_check_branch
      %67 = sbr.rel (0) target = $region25
    $region24: #{tpu_custom_call.1} parent=1 // pred_region
      %69 = vsyncadd [#allocation11], 0
      %s70 = sshll.u32 %s5, 4
      %s71 = int_to_ptr.hbm [resolvable:$true] %s70
      %s72 = sshll.u32 [#allocation10], 4
      %s73 = int_to_ptr.vmem [resolvable:$true] %s72
      %78 = dma.hbm_to_vmem [thread:$0]  %s71, 4096, %s73, [#allocation11], 1024, 1024, 64
    $region25: #{tpu_custom_call.1} parent=1 // pred_fallthru
      _
    // Predicated region
    $region26: #{tpu_custom_call.1} parent=1 // pred_check
      _
    $region27: #{tpu_custom_call.1} parent=1 // pred_check_branch
      %80 = sbr.rel (0) target = $region29
    $region28: #{tpu_custom_call.1} parent=1 // pred_region
      %82 = vsyncadd [#allocation11], 0
      %s84 = sshll.u32 %s6, 4
      %s85 = int_to_ptr.hbm [resolvable:$true] %s84
      %s86 = sshll.u32 [#allocation12], 4
      %s87 = int_to_ptr.vmem [resolvable:$true] %s86
      %89 = dma.hbm_to_vmem [thread:$0]  %s85, 128, %s87, [#allocation11]
    $region29: #{tpu_custom_call.1} parent=1 // pred_fallthru
      _
    // Predicated region
    $region30: #{tpu_custom_call.1} parent=1 // pred_check
      _
    $region31: #{tpu_custom_call.1} parent=1 // pred_check_branch
      %91 = sbr.rel (0) target = $region33
    $region32: #{tpu_custom_call.1} parent=1 // pred_region
      %93 = vsyncadd [#allocation14], 0
      %s94 = sshll.u32 %s7, 4
      %s95 = int_to_ptr.hbm [resolvable:$true] %s94
      %s96 = sshll.u32 [#allocation13], 4
      %s97 = int_to_ptr.vmem [resolvable:$true] %s96
      %102 = dma.hbm_to_vmem [thread:$0]  %s95, 512, %s97, [#allocation14], 128, 128, 8
    $region33: #{tpu_custom_call.1} parent=1 // pred_fallthru
      _
    // Predicated region
    $region34: #{tpu_custom_call.1} parent=1 // pred_check
      _
    $region35: #{tpu_custom_call.1} parent=1 // pred_check_branch
      %104 = sbr.rel (0) target = $region37
    $region36: #{tpu_custom_call.1} parent=1 // pred_region
      %106 = vsyncadd [#allocation14], 0
      %s107 = sshll.u32 %s8, 4
      %s108 = int_to_ptr.hbm [resolvable:$true] %s107
      %s109 = sshll.u32 [#allocation15], 4
      %s110 = int_to_ptr.vmem [resolvable:$true] %s109
      %115 = dma.hbm_to_vmem [thread:$0]  %s108, 512, %s110, [#allocation14], 128, 128, 8
    $region37: #{tpu_custom_call.1} parent=1 // pred_fallthru
      _
    // Predicated region
    $region38: #{tpu_custom_call.1} parent=1 // pred_check
      _
    $region39: #{tpu_custom_call.1} parent=1 // pred_check_branch
      %117 = sbr.rel (0) target = $region41
    $region40: #{tpu_custom_call.1} parent=1 // pred_region
      %119 = vsyncadd [#allocation17], 0
      %s120 = sshll.u32 %s9, 4
      %s121 = int_to_ptr.hbm [resolvable:$true] %s120
      %s122 = sshll.u32 [#allocation16], 4
      %s123 = int_to_ptr.vmem [resolvable:$true] %s122
      %128 = dma.hbm_to_vmem [thread:$0]  %s121, 512, %s123, [#allocation17], 128, 128, 8
    $region41: #{tpu_custom_call.1} parent=1 // pred_fallthru
      _
    // Predicated region
    $region42: #{tpu_custom_call.1} parent=1 // pred_check
      _
    $region43: #{tpu_custom_call.1} parent=1 // pred_check_branch
      %130 = sbr.rel (0) target = $region45
    $region44: #{tpu_custom_call.1} parent=1 // pred_region
      _
    $region45: #{tpu_custom_call.1} parent=1 // pred_fallthru
      _
    // Predicated region
    $region46: #{tpu_custom_call.1} parent=1 // pred_check
      _
    $region47: #{tpu_custom_call.1} parent=1 // pred_check_branch
      %132 = sbr.rel (0) target = $region49
    $region48: #{tpu_custom_call.1} parent=1 // pred_region
      %134 = vsyncadd [#allocation17], 0
      %s135 = sshll.u32 %s11, 4
      %s136 = int_to_ptr.hbm [resolvable:$true] %s135
      %s137 = sshll.u32 [#allocation18], 4
      %s138 = int_to_ptr.vmem [resolvable:$true] %s137
      %143 = dma.hbm_to_vmem [thread:$0]  %s136, 512, %s138, [#allocation17], 128, 128, 8
    $region49: #{tpu_custom_call.1} parent=1 // pred_fallthru
      _
    // Predicated region
    $region50: #{tpu_custom_call.1} parent=1 // pred_check
      _
    $region51: #{tpu_custom_call.1} parent=1 // pred_check_branch
      %145 = sbr.rel (0) target = $region53
    $region52: #{tpu_custom_call.1} parent=1 // pred_region
      _
    $region53: #{tpu_custom_call.1} parent=1 // pred_fallthru
      _
    // Predicated region
    $region54: #{tpu_custom_call.1} parent=1 // pred_check
      _
    $region55: #{tpu_custom_call.1} parent=1 // pred_check_branch
      %147 = sbr.rel (0) target = $region57
    $region56: #{tpu_custom_call.1} parent=1 // pred_region
      _
    $region57: #{tpu_custom_call.1} parent=1 // pred_fallthru
      _
    // Predicated region
    $region58: #{tpu_custom_call.1} parent=1 // pred_check
      _
    $region59: #{tpu_custom_call.1} parent=1 // pred_check_branch
      %149 = sbr.rel (0) target = $region61
    $region60: #{tpu_custom_call.1} parent=1 // pred_region
      %151 = dma.done [#allocation5], 64
    $region61: #{tpu_custom_call.1} parent=1 // pred_fallthru
      _
    // Predicated region
    $region62: #{tpu_custom_call.1} parent=1 // pred_check
      _
    $region63: #{tpu_custom_call.1} parent=1 // pred_check_branch
      %153 = sbr.rel (0) target = $region65
    $region64: #{tpu_custom_call.1} parent=1 // pred_region
      %155 = dma.done [#allocation8], 512
    $region65: #{tpu_custom_call.1} parent=1 // pred_fallthru
      _
    // Predicated region
    $region66: #{tpu_custom_call.1} parent=1 // pred_check
      _
    $region67: #{tpu_custom_call.1} parent=1 // pred_check_branch
      %157 = sbr.rel (0) target = $region69
    $region68: #{tpu_custom_call.1} parent=1 // pred_region
      %159 = dma.done [#allocation8], 512
    $region69: #{tpu_custom_call.1} parent=1 // pred_fallthru
      _
    // Predicated region
    $region70: #{tpu_custom_call.1} parent=1 // pred_check
      _
    $region71: #{tpu_custom_call.1} parent=1 // pred_check_branch
      %161 = sbr.rel (0) target = $region73
    $region72: #{tpu_custom_call.1} parent=1 // pred_region
      %163 = dma.done [#allocation11], 4096
    $region73: #{tpu_custom_call.1} parent=1 // pred_fallthru
      _
    // Predicated region
    $region74: #{tpu_custom_call.1} parent=1 // pred_check
      _
    $region75: #{tpu_custom_call.1} parent=1 // pred_check_branch
      %165 = sbr.rel (0) target = $region77
    $region76: #{tpu_custom_call.1} parent=1 // pred_region
      %167 = dma.done [#allocation11], 128
    $region77: #{tpu_custom_call.1} parent=1 // pred_fallthru
      _
    // Predicated region
    $region78: #{tpu_custom_call.1} parent=1 // pred_check
      _
    $region79: #{tpu_custom_call.1} parent=1 // pred_check_branch
      %169 = sbr.rel (0) target = $region81
    $region80: #{tpu_custom_call.1} parent=1 // pred_region
      %171 = dma.done [#allocation14], 512
    $region81: #{tpu_custom_call.1} parent=1 // pred_fallthru
      _
    // Predicated region
    $region82: #{tpu_custom_call.1} parent=1 // pred_check
      _
    $region83: #{tpu_custom_call.1} parent=1 // pred_check_branch
      %173 = sbr.rel (0) target = $region85
    $region84: #{tpu_custom_call.1} parent=1 // pred_region
      %175 = dma.done [#allocation14], 512
    $region85: #{tpu_custom_call.1} parent=1 // pred_fallthru
      _
    // Predicated region
    $region86: #{tpu_custom_call.1} parent=1 // pred_check
      _
    $region87: #{tpu_custom_call.1} parent=1 // pred_check_branch
      %177 = sbr.rel (0) target = $region89
    $region88: #{tpu_custom_call.1} parent=1 // pred_region
      %179 = dma.done [#allocation17], 512
    $region89: #{tpu_custom_call.1} parent=1 // pred_fallthru
      _
    // Predicated region
    $region90: #{tpu_custom_call.1} parent=1 // pred_check
      _
    $region91: #{tpu_custom_call.1} parent=1 // pred_check_branch
      %181 = sbr.rel (0) target = $region93
    $region92: #{tpu_custom_call.1} parent=1 // pred_region
      %183 = dma.done [#allocation17], 512
    $region93: #{tpu_custom_call.1} parent=1 // pred_fallthru
      _
    %v184 = vld [vmem:[#allocation4] sm:$0xf]
    %v185 = vld [vmem:[#allocation7] sm:$0xff]
    %v186 = vld [vmem:[#allocation7 + $0x8] sm:$0xff]
    %v187 = vld [vmem:[#allocation7 + $0x10] sm:$0xff]
    %v188 = vld [vmem:[#allocation7 + $0x18] sm:$0x3f]
    %v189 = vld [vmem:[%s2] sm:$0x1]
    %v191 = vperm.slane %v189, 0
    %vm193 = vcmask 244736
    %v195 = vsel %vm193, %v184, 0
    %vm197 = vcmask 1045504
    %v199 = vsel %vm197, %v188, 0
    %201 = vmatpush.msra.mxu0 0.0
    %202 = vmatpush.msra.mxu0 0.0
    %203 = vmatpush.msra.mxu0 0.0
    %204 = vmatpush.msra.mxu0 0.0
    %205 = vmatpush.msra.mxu0 0.0
    %206 = vmatpush.msra.mxu0 0.0
    %207 = vmatpush.msra.mxu0 0.0
    %208 = vmatpush.msra.mxu0 0.0
    %209 = vmatpush.msra.mxu0 0.0
    %210 = vmatpush.msra.mxu0 0.0
    %211 = vmatpush.msra.mxu0 0.0
    %212 = vmatpush.msra.mxu0 0.0
    %213 = vmatpush.msra.mxu0 %v199
    %214 = vmatpush.msra.mxu0 %v187
    %215 = vmatpush.msra.mxu0 %v186
    %216 = vmatpush.msra.mxu0 %v185
    %217 = vmatmul.f32.gmra.mxu0 %v195
    %v218 = vpop.f32.mrf.mxu0
    %v219 = vadd.f32 %v191, %v218
    %220 = vdwg.mxu0
    %v221 = vmax.f32 %v219, 0.0
    %v222 = vld [vmem:[#allocation9] sm:$0xff]
    %v223 = vld [vmem:[#allocation9 + $0x8] sm:$0xff]
    %v224 = vld [vmem:[#allocation9 + $0x10] sm:$0xff]
    %v225 = vld [vmem:[#allocation9 + $0x18] sm:$0xff]
    %v226 = vld [vmem:[%s4] sm:$0x1]
    %v228 = vperm.slane %v226, 0
    %vm230 = vcmask 261120
    %v232 = vsel %vm230, %v221, 0
    %234 = vmatpush.msra.mxu0 0.0
    %235 = vmatpush.msra.mxu0 0.0
    %236 = vmatpush.msra.mxu0 0.0
    %237 = vmatpush.msra.mxu0 0.0
    %238 = vmatpush.msra.mxu0 0.0
    %239 = vmatpush.msra.mxu0 0.0
    %240 = vmatpush.msra.mxu0 0.0
    %241 = vmatpush.msra.mxu0 0.0
    %242 = vmatpush.msra.mxu0 0.0
    %243 = vmatpush.msra.mxu0 0.0
    %244 = vmatpush.msra.mxu0 0.0
    %245 = vmatpush.msra.mxu0 0.0
    %246 = vmatpush.msra.mxu0 %v225
    %247 = vmatpush.msra.mxu0 %v224
    %248 = vmatpush.msra.mxu0 %v223
    %249 = vmatpush.msra.mxu0 %v222
    %250 = vmatmul.f32.gmra.mxu0 %v232
    %v251 = vpop.f32.mrf.mxu0
    %v252 = vadd.f32 %v228, %v251
    %253 = vdwg.mxu0
    %v254 = vmax.f32 %v252, 0.0
    %v255 = vld [vmem:[#allocation10] sm:$0xff]
    %v256 = vld [vmem:[#allocation10 + $0x8] sm:$0xff]
    %v257 = vld [vmem:[#allocation10 + $0x10] sm:$0xff]
    %v258 = vld [vmem:[#allocation10 + $0x18] sm:$0xff]
    %v259 = vld [vmem:[#allocation10 + $0x20] sm:$0xff]
    %v260 = vld [vmem:[#allocation10 + $0x28] sm:$0xff]
    %v261 = vld [vmem:[#allocation10 + $0x30] sm:$0xff]
    %v262 = vld [vmem:[#allocation10 + $0x38] sm:$0xff]
    %v263 = vld [vmem:[#allocation10 + $0x40] sm:$0xff]
    %v264 = vld [vmem:[#allocation10 + $0x48] sm:$0xff]
    %v265 = vld [vmem:[#allocation10 + $0x50] sm:$0xff]
    %v266 = vld [vmem:[#allocation10 + $0x58] sm:$0xff]
    %v267 = vld [vmem:[#allocation10 + $0x60] sm:$0xff]
    %v268 = vld [vmem:[#allocation10 + $0x68] sm:$0xff]
    %v269 = vld [vmem:[#allocation10 + $0x70] sm:$0xff]
    %v270 = vld [vmem:[#allocation10 + $0x78] sm:$0xff]
    %v271 = vld [vmem:[#allocation10 + $0x80] sm:$0xff]
    %v272 = vld [vmem:[#allocation10 + $0x88] sm:$0xff]
    %v273 = vld [vmem:[#allocation10 + $0x90] sm:$0xff]
    %v274 = vld [vmem:[#allocation10 + $0x98] sm:$0xff]
    %v275 = vld [vmem:[#allocation10 + $0xa0] sm:$0xff]
    %v276 = vld [vmem:[#allocation10 + $0xa8] sm:$0xff]
    %v277 = vld [vmem:[#allocation10 + $0xb0] sm:$0xff]
    %v278 = vld [vmem:[#allocation10 + $0xb8] sm:$0xff]
    %v279 = vld [vmem:[#allocation10 + $0xc0] sm:$0xff]
    %v280 = vld [vmem:[#allocation10 + $0xc8] sm:$0xff]
    %v281 = vld [vmem:[#allocation10 + $0xd0] sm:$0xff]
    %v282 = vld [vmem:[#allocation10 + $0xd8] sm:$0xff]
    %v283 = vld [vmem:[#allocation10 + $0xe0] sm:$0xff]
    %v284 = vld [vmem:[#allocation10 + $0xe8] sm:$0xff]
    %v285 = vld [vmem:[#allocation10 + $0xf0] sm:$0xff]
    %v286 = vld [vmem:[#allocation10 + $0xf8] sm:$0xff]
    %v287 = vld [vmem:[#allocation12] sm:$0xff]
    %v289 = vperm.slane %v287, 0
    %v290 = vperm.slane %v287, 1
    %v291 = vperm.slane %v287, 2
    %v292 = vperm.slane %v287, 3
    %v293 = vperm.slane %v287, 4
    %v294 = vperm.slane %v287, 5
    %v295 = vperm.slane %v287, 6
    %v296 = vperm.slane %v287, 7
    %v306 = vsel %vm230, %v254, 0
    %308 = vmatpush.msra.mxu0 0.0
    %309 = vmatpush.msra.mxu0 0.0
    %310 = vmatpush.msra.mxu0 0.0
    %311 = vmatpush.msra.mxu0 0.0
    %312 = vmatpush.msra.mxu0 0.0
    %313 = vmatpush.msra.mxu0 0.0
    %314 = vmatpush.msra.mxu0 0.0
    %315 = vmatpush.msra.mxu0 0.0
    %316 = vmatpush.msra.mxu0 0.0
    %317 = vmatpush.msra.mxu0 0.0
    %318 = vmatpush.msra.mxu0 0.0
    %319 = vmatpush.msra.mxu0 0.0
    %320 = vmatpush.msra.mxu0 %v279
    %321 = vmatpush.msra.mxu0 %v271
    %322 = vmatpush.msra.mxu0 %v263
    %323 = vmatpush.msra.mxu0 %v255
    %324 = vmatmul.f32.gmra.mxu0 %v306
    %v325 = vpop.f32.mrf.mxu0
    %v326 = vadd.f32 %v289, %v325
    %327 = vdwg.mxu0
    %328 = vmatpush.msra.mxu0 0.0
    %329 = vmatpush.msra.mxu0 0.0
    %330 = vmatpush.msra.mxu0 0.0
    %331 = vmatpush.msra.mxu0 0.0
    %332 = vmatpush.msra.mxu0 0.0
    %333 = vmatpush.msra.mxu0 0.0
    %334 = vmatpush.msra.mxu0 0.0
    %335 = vmatpush.msra.mxu0 0.0
    %336 = vmatpush.msra.mxu0 0.0
    %337 = vmatpush.msra.mxu0 0.0
    %338 = vmatpush.msra.mxu0 0.0
    %339 = vmatpush.msra.mxu0 0.0
    %340 = vmatpush.msra.mxu0 %v280
    %341 = vmatpush.msra.mxu0 %v272
    %342 = vmatpush.msra.mxu0 %v264
    %343 = vmatpush.msra.mxu0 %v256
    %344 = vmatmul.f32.gmra.mxu0 %v306
    %v345 = vpop.f32.mrf.mxu0
    %v346 = vadd.f32 %v290, %v345
    %347 = vdwg.mxu0
    %348 = vmatpush.msra.mxu0 0.0
    %349 = vmatpush.msra.mxu0 0.0
    %350 = vmatpush.msra.mxu0 0.0
    %351 = vmatpush.msra.mxu0 0.0
    %352 = vmatpush.msra.mxu0 0.0
    %353 = vmatpush.msra.mxu0 0.0
    %354 = vmatpush.msra.mxu0 0.0
    %355 = vmatpush.msra.mxu0 0.0
    %356 = vmatpush.msra.mxu0 0.0
    %357 = vmatpush.msra.mxu0 0.0
    %358 = vmatpush.msra.mxu0 0.0
    %359 = vmatpush.msra.mxu0 0.0
    %360 = vmatpush.msra.mxu0 %v281
    %361 = vmatpush.msra.mxu0 %v273
    %362 = vmatpush.msra.mxu0 %v265
    %363 = vmatpush.msra.mxu0 %v257
    %364 = vmatmul.f32.gmra.mxu0 %v306
    %v365 = vpop.f32.mrf.mxu0
    %v366 = vadd.f32 %v291, %v365
    %367 = vdwg.mxu0
    %368 = vmatpush.msra.mxu0 0.0
    %369 = vmatpush.msra.mxu0 0.0
    %370 = vmatpush.msra.mxu0 0.0
    %371 = vmatpush.msra.mxu0 0.0
    %372 = vmatpush.msra.mxu0 0.0
    %373 = vmatpush.msra.mxu0 0.0
    %374 = vmatpush.msra.mxu0 0.0
    %375 = vmatpush.msra.mxu0 0.0
    %376 = vmatpush.msra.mxu0 0.0
    %377 = vmatpush.msra.mxu0 0.0
    %378 = vmatpush.msra.mxu0 0.0
    %379 = vmatpush.msra.mxu0 0.0
    %380 = vmatpush.msra.mxu0 %v282
    %381 = vmatpush.msra.mxu0 %v274
    %382 = vmatpush.msra.mxu0 %v266
    %383 = vmatpush.msra.mxu0 %v258
    %384 = vmatmul.f32.gmra.mxu0 %v306
    %v385 = vpop.f32.mrf.mxu0
    %v386 = vadd.f32 %v292, %v385
    %387 = vdwg.mxu0
    %388 = vmatpush.msra.mxu0 0.0
    %389 = vmatpush.msra.mxu0 0.0
    %390 = vmatpush.msra.mxu0 0.0
    %391 = vmatpush.msra.mxu0 0.0
    %392 = vmatpush.msra.mxu0 0.0
    %393 = vmatpush.msra.mxu0 0.0
    %394 = vmatpush.msra.mxu0 0.0
    %395 = vmatpush.msra.mxu0 0.0
    %396 = vmatpush.msra.mxu0 0.0
    %397 = vmatpush.msra.mxu0 0.0
    %398 = vmatpush.msra.mxu0 0.0
    %399 = vmatpush.msra.mxu0 0.0
    %400 = vmatpush.msra.mxu0 %v283
    %401 = vmatpush.msra.mxu0 %v275
    %402 = vmatpush.msra.mxu0 %v267
    %403 = vmatpush.msra.mxu0 %v259
    %404 = vmatmul.f32.gmra.mxu0 %v306
    %v405 = vpop.f32.mrf.mxu0
    %v406 = vadd.f32 %v293, %v405
    %407 = vdwg.mxu0
    %408 = vmatpush.msra.mxu0 0.0
    %409 = vmatpush.msra.mxu0 0.0
    %410 = vmatpush.msra.mxu0 0.0
    %411 = vmatpush.msra.mxu0 0.0
    %412 = vmatpush.msra.mxu0 0.0
    %413 = vmatpush.msra.mxu0 0.0
    %414 = vmatpush.msra.mxu0 0.0
    %415 = vmatpush.msra.mxu0 0.0
    %416 = vmatpush.msra.mxu0 0.0
    %417 = vmatpush.msra.mxu0 0.0
    %418 = vmatpush.msra.mxu0 0.0
    %419 = vmatpush.msra.mxu0 0.0
    %420 = vmatpush.msra.mxu0 %v284
    %421 = vmatpush.msra.mxu0 %v276
    %422 = vmatpush.msra.mxu0 %v268
    %423 = vmatpush.msra.mxu0 %v260
    %424 = vmatmul.f32.gmra.mxu0 %v306
    %v425 = vpop.f32.mrf.mxu0
    %v426 = vadd.f32 %v294, %v425
    %427 = vdwg.mxu0
    %428 = vmatpush.msra.mxu0 0.0
    %429 = vmatpush.msra.mxu0 0.0
    %430 = vmatpush.msra.mxu0 0.0
    %431 = vmatpush.msra.mxu0 0.0
    %432 = vmatpush.msra.mxu0 0.0
    %433 = vmatpush.msra.mxu0 0.0
    %434 = vmatpush.msra.mxu0 0.0
    %435 = vmatpush.msra.mxu0 0.0
    %436 = vmatpush.msra.mxu0 0.0
    %437 = vmatpush.msra.mxu0 0.0
    %438 = vmatpush.msra.mxu0 0.0
    %439 = vmatpush.msra.mxu0 0.0
    %440 = vmatpush.msra.mxu0 %v285
    %441 = vmatpush.msra.mxu0 %v277
    %442 = vmatpush.msra.mxu0 %v269
    %443 = vmatpush.msra.mxu0 %v261
    %444 = vmatmul.f32.gmra.mxu0 %v306
    %v445 = vpop.f32.mrf.mxu0
    %v446 = vadd.f32 %v295, %v445
    %447 = vdwg.mxu0
    %448 = vmatpush.msra.mxu0 0.0
    %449 = vmatpush.msra.mxu0 0.0
    %450 = vmatpush.msra.mxu0 0.0
    %451 = vmatpush.msra.mxu0 0.0
    %452 = vmatpush.msra.mxu0 0.0
    %453 = vmatpush.msra.mxu0 0.0
    %454 = vmatpush.msra.mxu0 0.0
    %455 = vmatpush.msra.mxu0 0.0
    %456 = vmatpush.msra.mxu0 0.0
    %457 = vmatpush.msra.mxu0 0.0
    %458 = vmatpush.msra.mxu0 0.0
    %459 = vmatpush.msra.mxu0 0.0
    %460 = vmatpush.msra.mxu0 %v286
    %461 = vmatpush.msra.mxu0 %v278
    %462 = vmatpush.msra.mxu0 %v270
    %463 = vmatpush.msra.mxu0 %v262
    %464 = vmatmul.f32.gmra.mxu0 %v306
    %v465 = vpop.f32.mrf.mxu0
    %v466 = vadd.f32 %v296, %v465
    %467 = vdwg.mxu0
    %v468 = vld [vmem:[%s12] sm:$0x1]
    %v469 = vld [vmem:[%s13] sm:$0x1]
    %v470 = vld [vmem:[#allocation13] sm:$0xff]
    %v471 = vld [vmem:[#allocation13 + $0x8] sm:$0xff]
    %v472 = vld [vmem:[#allocation13 + $0x10] sm:$0xff]
    %v473 = vld [vmem:[#allocation13 + $0x18] sm:$0xff]
    %v475 = vsel %vm230, 0.0, 0
    %477 = vmatpush.msra.mxu0 0.0
    %478 = vmatpush.msra.mxu0 0.0
    %479 = vmatpush.msra.mxu0 0.0
    %480 = vmatpush.msra.mxu0 0.0
    %481 = vmatpush.msra.mxu0 0.0
    %482 = vmatpush.msra.mxu0 0.0
    %483 = vmatpush.msra.mxu0 0.0
    %484 = vmatpush.msra.mxu0 0.0
    %485 = vmatpush.msra.mxu0 0.0
    %486 = vmatpush.msra.mxu0 0.0
    %487 = vmatpush.msra.mxu0 0.0
    %488 = vmatpush.msra.mxu0 0.0
    %489 = vmatpush.msra.mxu0 %v473
    %490 = vmatpush.msra.mxu0 %v472
    %491 = vmatpush.msra.mxu0 %v471
    %492 = vmatpush.msra.mxu0 %v470
    %493 = vmatmul.f32.gmra.mxu0 %v475
    %v494 = vpop.f32.mrf.mxu0
    %v495 = vadd.f32 0.0, %v494
    %496 = vdwg.mxu0
    %v497 = vadd.f32 %v326, %v495
    %v498 = vtanh.pop %v497
    %v500 = vperm.slane %v468, 0
    %v502 = vmul.f32 %v498, %v500
    %v504 = vperm.slane %v469, 0
    %v506 = vadd.f32 %v502, %v504
    %v507 = vmul.f32 %v506, 0.0
    %509 = vrot.lane.b32.xlu0 %v506, 64
    %v510 = vpop.permute.xlu0 %509
    %v512 = vmul.f32 %v506, %v510
    %514 = vrot.lane.b32.xlu0 %v512, 32
    %v515 = vpop.permute.xlu0 %514
    %v517 = vadd.f32 %v507, %v515
    %v518 = vtanh.pop %v517
    %520 = vrot.lane.b32.xlu0 %v518, 64
    %v521 = vpop.permute.xlu0 %520
    %v523 = vmul.f32 %v506, %v521
    %525 = vrot.lane.b32.xlu0 %v523, 32
    %v526 = vpop.permute.xlu0 %525
    %vm528 = vcmask 257024
    %529 = vst.msk [vmem:[#allocation2] sm:$0xf] %vm528, %v526
    %v530 = vsel %vm230, %v526, 0
    %532 = vmatpush.msra.mxu0 0.0
    %533 = vmatpush.msra.mxu0 0.0
    %534 = vmatpush.msra.mxu0 0.0
    %535 = vmatpush.msra.mxu0 0.0
    %536 = vmatpush.msra.mxu0 0.0
    %537 = vmatpush.msra.mxu0 0.0
    %538 = vmatpush.msra.mxu0 0.0
    %539 = vmatpush.msra.mxu0 0.0
    %540 = vmatpush.msra.mxu0 0.0
    %541 = vmatpush.msra.mxu0 0.0
    %542 = vmatpush.msra.mxu0 0.0
    %543 = vmatpush.msra.mxu0 0.0
    %544 = vmatpush.msra.mxu0 %v473
    %545 = vmatpush.msra.mxu0 %v472
    %546 = vmatpush.msra.mxu0 %v471
    %547 = vmatpush.msra.mxu0 %v470
    %548 = vmatmul.f32.gmra.mxu0 %v530
    %v549 = vpop.f32.mrf.mxu0
    %v550 = vadd.f32 0.0, %v549
    %551 = vdwg.mxu0
    %v552 = vadd.f32 %v346, %v550
    %v553 = vtanh.pop %v552
    %v554 = vmul.f32 %v553, %v500
    %v555 = vadd.f32 %v554, %v504
    %v556 = vmul.f32 %v555, %v517
    %558 = vrot.lane.b32.xlu0 %v555, 64
    %v559 = vpop.permute.xlu0 %558
    %v561 = vmul.f32 %v555, %v559
    %563 = vrot.lane.b32.xlu0 %v561, 32
    %v564 = vpop.permute.xlu0 %563
    %v566 = vadd.f32 %v556, %v564
    %v567 = vtanh.pop %v566
    %569 = vrot.lane.b32.xlu0 %v567, 64
    %v570 = vpop.permute.xlu0 %569
    %v572 = vmul.f32 %v555, %v570
    %574 = vrot.lane.b32.xlu0 %v572, 32
    %v575 = vpop.permute.xlu0 %574
    %577 = vst.msk [vmem:[#allocation2 + $0x4] sm:$0xf] %vm528, %v575
    %v578 = vsel %vm230, %v575, 0
    %580 = vmatpush.msra.mxu0 0.0
    %581 = vmatpush.msra.mxu0 0.0
    %582 = vmatpush.msra.mxu0 0.0
    %583 = vmatpush.msra.mxu0 0.0
    %584 = vmatpush.msra.mxu0 0.0
    %585 = vmatpush.msra.mxu0 0.0
    %586 = vmatpush.msra.mxu0 0.0
    %587 = vmatpush.msra.mxu0 0.0
    %588 = vmatpush.msra.mxu0 0.0
    %589 = vmatpush.msra.mxu0 0.0
    %590 = vmatpush.msra.mxu0 0.0
    %591 = vmatpush.msra.mxu0 0.0
    %592 = vmatpush.msra.mxu0 %v473
    %593 = vmatpush.msra.mxu0 %v472
    %594 = vmatpush.msra.mxu0 %v471
    %595 = vmatpush.msra.mxu0 %v470
    %596 = vmatmul.f32.gmra.mxu0 %v578
    %v597 = vpop.f32.mrf.mxu0
    %v598 = vadd.f32 0.0, %v597
    %599 = vdwg.mxu0
    %v600 = vadd.f32 %v366, %v598
    %v601 = vtanh.pop %v600
    %v602 = vmul.f32 %v601, %v500
    %v603 = vadd.f32 %v602, %v504
    %v604 = vmul.f32 %v603, %v566
    %606 = vrot.lane.b32.xlu0 %v603, 64
    %v607 = vpop.permute.xlu0 %606
    %v609 = vmul.f32 %v603, %v607
    %611 = vrot.lane.b32.xlu0 %v609, 32
    %v612 = vpop.permute.xlu0 %611
    %v614 = vadd.f32 %v604, %v612
    %v615 = vtanh.pop %v614
    %617 = vrot.lane.b32.xlu0 %v615, 64
    %v618 = vpop.permute.xlu0 %617
    %v620 = vmul.f32 %v603, %v618
    %622 = vrot.lane.b32.xlu0 %v620, 32
    %v623 = vpop.permute.xlu0 %622
    %625 = vst.msk [vmem:[#allocation2 + $0x8] sm:$0xf] %vm528, %v623
    %v626 = vsel %vm230, %v623, 0
    %628 = vmatpush.msra.mxu0 0.0
    %629 = vmatpush.msra.mxu0 0.0
    %630 = vmatpush.msra.mxu0 0.0
    %631 = vmatpush.msra.mxu0 0.0
    %632 = vmatpush.msra.mxu0 0.0
    %633 = vmatpush.msra.mxu0 0.0
    %634 = vmatpush.msra.mxu0 0.0
    %635 = vmatpush.msra.mxu0 0.0
    %636 = vmatpush.msra.mxu0 0.0
    %637 = vmatpush.msra.mxu0 0.0
    %638 = vmatpush.msra.mxu0 0.0
    %639 = vmatpush.msra.mxu0 0.0
    %640 = vmatpush.msra.mxu0 %v473
    %641 = vmatpush.msra.mxu0 %v472
    %642 = vmatpush.msra.mxu0 %v471
    %643 = vmatpush.msra.mxu0 %v470
    %644 = vmatmul.f32.gmra.mxu0 %v626
    %v645 = vpop.f32.mrf.mxu0
    %v646 = vadd.f32 0.0, %v645
    %647 = vdwg.mxu0
    %v648 = vadd.f32 %v386, %v646
    %v649 = vtanh.pop %v648
    %v650 = vmul.f32 %v649, %v500
    %v651 = vadd.f32 %v650, %v504
    %v652 = vmul.f32 %v651, %v614
    %654 = vrot.lane.b32.xlu0 %v651, 64
    %v655 = vpop.permute.xlu0 %654
    %v657 = vmul.f32 %v651, %v655
    %659 = vrot.lane.b32.xlu0 %v657, 32
    %v660 = vpop.permute.xlu0 %659
    %v662 = vadd.f32 %v652, %v660
    %v663 = vtanh.pop %v662
    %665 = vrot.lane.b32.xlu0 %v663, 64
    %v666 = vpop.permute.xlu0 %665
    %v668 = vmul.f32 %v651, %v666
    %670 = vrot.lane.b32.xlu0 %v668, 32
    %v671 = vpop.permute.xlu0 %670
    %673 = vst.msk [vmem:[#allocation2 + $0xc] sm:$0xf] %vm528, %v671
    %v674 = vsel %vm230, %v671, 0
    %676 = vmatpush.msra.mxu0 0.0
    %677 = vmatpush.msra.mxu0 0.0
    %678 = vmatpush.msra.mxu0 0.0
    %679 = vmatpush.msra.mxu0 0.0
    %680 = vmatpush.msra.mxu0 0.0
    %681 = vmatpush.msra.mxu0 0.0
    %682 = vmatpush.msra.mxu0 0.0
    %683 = vmatpush.msra.mxu0 0.0
    %684 = vmatpush.msra.mxu0 0.0
    %685 = vmatpush.msra.mxu0 0.0
    %686 = vmatpush.msra.mxu0 0.0
    %687 = vmatpush.msra.mxu0 0.0
    %688 = vmatpush.msra.mxu0 %v473
    %689 = vmatpush.msra.mxu0 %v472
    %690 = vmatpush.msra.mxu0 %v471
    %691 = vmatpush.msra.mxu0 %v470
    %692 = vmatmul.f32.gmra.mxu0 %v674
    %v693 = vpop.f32.mrf.mxu0
    %v694 = vadd.f32 0.0, %v693
    %695 = vdwg.mxu0
    %v696 = vadd.f32 %v406, %v694
    %v697 = vtanh.pop %v696
    %v698 = vmul.f32 %v697, %v500
    %v699 = vadd.f32 %v698, %v504
    %v700 = vmul.f32 %v699, %v662
    %702 = vrot.lane.b32.xlu0 %v699, 64
    %v703 = vpop.permute.xlu0 %702
    %v705 = vmul.f32 %v699, %v703
    %707 = vrot.lane.b32.xlu0 %v705, 32
    %v708 = vpop.permute.xlu0 %707
    %v710 = vadd.f32 %v700, %v708
    %v711 = vtanh.pop %v710
    %713 = vrot.lane.b32.xlu0 %v711, 64
    %v714 = vpop.permute.xlu0 %713
    %v716 = vmul.f32 %v699, %v714
    %718 = vrot.lane.b32.xlu0 %v716, 32
    %v719 = vpop.permute.xlu0 %718
    %721 = vst.msk [vmem:[#allocation2 + $0x10] sm:$0xf] %vm528, %v719
    %v722 = vsel %vm230, %v719, 0
    %724 = vmatpush.msra.mxu0 0.0
    %725 = vmatpush.msra.mxu0 0.0
    %726 = vmatpush.msra.mxu0 0.0
    %727 = vmatpush.msra.mxu0 0.0
    %728 = vmatpush.msra.mxu0 0.0
    %729 = vmatpush.msra.mxu0 0.0
    %730 = vmatpush.msra.mxu0 0.0
    %731 = vmatpush.msra.mxu0 0.0
    %732 = vmatpush.msra.mxu0 0.0
    %733 = vmatpush.msra.mxu0 0.0
    %734 = vmatpush.msra.mxu0 0.0
    %735 = vmatpush.msra.mxu0 0.0
    %736 = vmatpush.msra.mxu0 %v473
    %737 = vmatpush.msra.mxu0 %v472
    %738 = vmatpush.msra.mxu0 %v471
    %739 = vmatpush.msra.mxu0 %v470
    %740 = vmatmul.f32.gmra.mxu0 %v722
    %v741 = vpop.f32.mrf.mxu0
    %v742 = vadd.f32 0.0, %v741
    %743 = vdwg.mxu0
    %v744 = vadd.f32 %v426, %v742
    %v745 = vtanh.pop %v744
    %v746 = vmul.f32 %v745, %v500
    %v747 = vadd.f32 %v746, %v504
    %v748 = vmul.f32 %v747, %v710
    %750 = vrot.lane.b32.xlu0 %v747, 64
    %v751 = vpop.permute.xlu0 %750
    %v753 = vmul.f32 %v747, %v751
    %755 = vrot.lane.b32.xlu0 %v753, 32
    %v756 = vpop.permute.xlu0 %755
    %v758 = vadd.f32 %v748, %v756
    %v759 = vtanh.pop %v758
    %761 = vrot.lane.b32.xlu0 %v759, 64
    %v762 = vpop.permute.xlu0 %761
    %v764 = vmul.f32 %v747, %v762
    %766 = vrot.lane.b32.xlu0 %v764, 32
    %v767 = vpop.permute.xlu0 %766
    %769 = vst.msk [vmem:[#allocation2 + $0x14] sm:$0xf] %vm528, %v767
    %v770 = vsel %vm230, %v767, 0
    %772 = vmatpush.msra.mxu0 0.0
    %773 = vmatpush.msra.mxu0 0.0
    %774 = vmatpush.msra.mxu0 0.0
    %775 = vmatpush.msra.mxu0 0.0
    %776 = vmatpush.msra.mxu0 0.0
    %777 = vmatpush.msra.mxu0 0.0
    %778 = vmatpush.msra.mxu0 0.0
    %779 = vmatpush.msra.mxu0 0.0
    %780 = vmatpush.msra.mxu0 0.0
    %781 = vmatpush.msra.mxu0 0.0
    %782 = vmatpush.msra.mxu0 0.0
    %783 = vmatpush.msra.mxu0 0.0
    %784 = vmatpush.msra.mxu0 %v473
    %785 = vmatpush.msra.mxu0 %v472
    %786 = vmatpush.msra.mxu0 %v471
    %787 = vmatpush.msra.mxu0 %v470
    %788 = vmatmul.f32.gmra.mxu0 %v770
    %v789 = vpop.f32.mrf.mxu0
    %v790 = vadd.f32 0.0, %v789
    %791 = vdwg.mxu0
    %v792 = vadd.f32 %v446, %v790
    %v793 = vtanh.pop %v792
    %v794 = vmul.f32 %v793, %v500
    %v795 = vadd.f32 %v794, %v504
    %v796 = vmul.f32 %v795, %v758
    %798 = vrot.lane.b32.xlu0 %v795, 64
    %v799 = vpop.permute.xlu0 %798
    %v801 = vmul.f32 %v795, %v799
    %803 = vrot.lane.b32.xlu0 %v801, 32
    %v804 = vpop.permute.xlu0 %803
    %v806 = vadd.f32 %v796, %v804
    %v807 = vtanh.pop %v806
    %809 = vrot.lane.b32.xlu0 %v807, 64
    %v810 = vpop.permute.xlu0 %809
    %v812 = vmul.f32 %v795, %v810
    %814 = vrot.lane.b32.xlu0 %v812, 32
    %v815 = vpop.permute.xlu0 %814
    %817 = vst.msk [vmem:[#allocation2 + $0x18] sm:$0xf] %vm528, %v815
    %v818 = vsel %vm230, %v815, 0
    %820 = vmatpush.msra.mxu0 0.0
    %821 = vmatpush.msra.mxu0 0.0
    %822 = vmatpush.msra.mxu0 0.0
    %823 = vmatpush.msra.mxu0 0.0
    %824 = vmatpush.msra.mxu0 0.0
    %825 = vmatpush.msra.mxu0 0.0
    %826 = vmatpush.msra.mxu0 0.0
    %827 = vmatpush.msra.mxu0 0.0
    %828 = vmatpush.msra.mxu0 0.0
    %829 = vmatpush.msra.mxu0 0.0
    %830 = vmatpush.msra.mxu0 0.0
    %831 = vmatpush.msra.mxu0 0.0
    %832 = vmatpush.msra.mxu0 %v473
    %833 = vmatpush.msra.mxu0 %v472
    %834 = vmatpush.msra.mxu0 %v471
    %835 = vmatpush.msra.mxu0 %v470
    %836 = vmatmul.f32.gmra.mxu0 %v818
    %v837 = vpop.f32.mrf.mxu0
    %v838 = vadd.f32 0.0, %v837
    %839 = vdwg.mxu0
    %v840 = vadd.f32 %v466, %v838
    %v841 = vtanh.pop %v840
    %v842 = vmul.f32 %v841, %v500
    %v843 = vadd.f32 %v842, %v504
    %v844 = vmul.f32 %v843, %v806
    %846 = vrot.lane.b32.xlu0 %v843, 64
    %v847 = vpop.permute.xlu0 %846
    %v849 = vmul.f32 %v843, %v847
    %851 = vrot.lane.b32.xlu0 %v849, 32
    %v852 = vpop.permute.xlu0 %851
    %v854 = vadd.f32 %v844, %v852
    %v855 = vtanh.pop %v854
    %857 = vrot.lane.b32.xlu0 %v855, 64
    %v858 = vpop.permute.xlu0 %857
    %v860 = vmul.f32 %v843, %v858
    %862 = vrot.lane.b32.xlu0 %v860, 32
    %v863 = vpop.permute.xlu0 %862
    %865 = vst.msk [vmem:[#allocation2 + $0x1c] sm:$0xf] %vm528, %v863
    %v866 = vld [vmem:[#allocation2] sm:$0xff]
    %v867 = vld [vmem:[#allocation2 + $0x8] sm:$0xff]
    %v868 = vld [vmem:[#allocation2 + $0x10] sm:$0xff]
    %v869 = vld [vmem:[#allocation2 + $0x18] sm:$0xff]
    %v870 = vld [vmem:[#allocation15] sm:$0xff]
    %v871 = vld [vmem:[#allocation15 + $0x8] sm:$0xff]
    %v872 = vld [vmem:[#allocation15 + $0x10] sm:$0xff]
    %v873 = vld [vmem:[#allocation15 + $0x18] sm:$0xff]
    %v875 = vsel %vm230, %v866, 0
    %v878 = vsel %vm230, %v867, 0
    %v881 = vsel %vm230, %v868, 0
    %v884 = vsel %vm230, %v869, 0
    %886 = vmatpush.msra.mxu0 0.0
    %887 = vmatpush.msra.mxu0 0.0
    %888 = vmatpush.msra.mxu0 0.0
    %889 = vmatpush.msra.mxu0 0.0
    %890 = vmatpush.msra.mxu0 0.0
    %891 = vmatpush.msra.mxu0 0.0
    %892 = vmatpush.msra.mxu0 0.0
    %893 = vmatpush.msra.mxu0 0.0
    %894 = vmatpush.msra.mxu0 0.0
    %895 = vmatpush.msra.mxu0 0.0
    %896 = vmatpush.msra.mxu0 0.0
    %897 = vmatpush.msra.mxu0 0.0
    %898 = vmatpush.msra.mxu0 %v873
    %899 = vmatpush.msra.mxu0 %v872
    %900 = vmatpush.msra.mxu0 %v871
    %901 = vmatpush.msra.mxu0 %v870
    %902 = vmatmul.f32.gmra.mxu0 %v875
    %v903 = vpop.f32.mrf.mxu0
    %v904 = vadd.f32 0.0, %v903
    %905 = vmatmul.f32.gmra.mxu0 %v878
    %v906 = vpop.f32.mrf.mxu0
    %v907 = vadd.f32 0.0, %v906
    %908 = vmatmul.f32.gmra.mxu0 %v881
    %v909 = vpop.f32.mrf.mxu0
    %v910 = vadd.f32 0.0, %v909
    %911 = vmatmul.f32.gmra.mxu0 %v884
    %v912 = vpop.f32.mrf.mxu0
    %v913 = vadd.f32 0.0, %v912
    %914 = vdwg.mxu0
    %v915 = vld [vmem:[#allocation16] sm:$0xff]
    %v916 = vld [vmem:[#allocation16 + $0x8] sm:$0xff]
    %v917 = vld [vmem:[#allocation16 + $0x10] sm:$0xff]
    %v918 = vld [vmem:[#allocation16 + $0x18] sm:$0xff]
    %919 = vmatpush.msra.mxu0 0.0
    %920 = vmatpush.msra.mxu0 0.0
    %921 = vmatpush.msra.mxu0 0.0
    %922 = vmatpush.msra.mxu0 0.0
    %923 = vmatpush.msra.mxu0 0.0
    %924 = vmatpush.msra.mxu0 0.0
    %925 = vmatpush.msra.mxu0 0.0
    %926 = vmatpush.msra.mxu0 0.0
    %927 = vmatpush.msra.mxu0 0.0
    %928 = vmatpush.msra.mxu0 0.0
    %929 = vmatpush.msra.mxu0 0.0
    %930 = vmatpush.msra.mxu0 0.0
    %931 = vmatpush.msra.mxu0 %v918
    %932 = vmatpush.msra.mxu0 %v917
    %933 = vmatpush.msra.mxu0 %v916
    %934 = vmatpush.msra.mxu0 %v915
    %935 = vmatmul.f32.gmra.mxu0 %v875
    %v936 = vpop.f32.mrf.mxu0
    %v937 = vadd.f32 0.0, %v936
    %938 = vmatmul.f32.gmra.mxu0 %v878
    %v939 = vpop.f32.mrf.mxu0
    %v940 = vadd.f32 0.0, %v939
    %941 = vmatmul.f32.gmra.mxu0 %v881
    %v942 = vpop.f32.mrf.mxu0
    %v943 = vadd.f32 0.0, %v942
    %944 = vmatmul.f32.gmra.mxu0 %v884
    %v945 = vpop.f32.mrf.mxu0
    %v946 = vadd.f32 0.0, %v945
    %947 = vdwg.mxu0
    %v948 = vld [vmem:[%s10] sm:$0x1]
    %v950 = vrot.slane %v946, 4
    %v952 = vadd.f32 %v904, %v950
    %v954 = vperm.slane %v948, 0
    %v956 = vadd.f32 %v952, %v954
    %v958 = vrot.slane %v943, 4
    %v960 = vadd.f32 %v907, %v958
    %v961 = vadd.f32 %v960, %v954
    %v963 = vrot.slane %v940, 4
    %v965 = vadd.f32 %v910, %v963
    %v966 = vadd.f32 %v965, %v954
    %v968 = vrot.slane %v937, 4
    %v970 = vadd.f32 %v913, %v968
    %v971 = vadd.f32 %v970, %v954
    %v972 = vld [vmem:[#allocation18] sm:$0xff]
    %v973 = vld [vmem:[#allocation18 + $0x8] sm:$0xff]
    %v974 = vld [vmem:[#allocation18 + $0x10] sm:$0xff]
    %v975 = vld [vmem:[#allocation18 + $0x18] sm:$0xff]
    %976 = vmatpush.msra.mxu0 0.0
    %977 = vmatpush.msra.mxu0 0.0
    %978 = vmatpush.msra.mxu0 0.0
    %979 = vmatpush.msra.mxu0 0.0
    %980 = vmatpush.msra.mxu0 0.0
    %981 = vmatpush.msra.mxu0 0.0
    %982 = vmatpush.msra.mxu0 0.0
    %983 = vmatpush.msra.mxu0 0.0
    %984 = vmatpush.msra.mxu0 0.0
    %985 = vmatpush.msra.mxu0 0.0
    %986 = vmatpush.msra.mxu0 0.0
    %987 = vmatpush.msra.mxu0 0.0
    %988 = vmatpush.msra.mxu0 %v975
    %989 = vmatpush.msra.mxu0 %v974
    %990 = vmatpush.msra.mxu0 %v973
    %991 = vmatpush.msra.mxu0 %v972
    %992 = vmatmul.f32.gmra.mxu0 %v475
    %v993 = vpop.f32.mrf.mxu0
    %v994 = vadd.f32 0.0, %v993
    %995 = vdwg.mxu0
    %v996 = vadd.f32 %v956, %v994
    %v997 = vtanh.pop %v996
    %v998 = vmul.f32 %v997, %v500
    %v999 = vadd.f32 %v998, %v504
    %v1000 = vmul.f32 %v999, 0.0
    %1002 = vrot.lane.b32.xlu0 %v999, 64
    %v1003 = vpop.permute.xlu0 %1002
    %v1005 = vmul.f32 %v999, %v1003
    %1007 = vrot.lane.b32.xlu0 %v1005, 32
    %v1008 = vpop.permute.xlu0 %1007
    %v1010 = vadd.f32 %v1000, %v1008
    %v1011 = vtanh.pop %v1010
    %1013 = vrot.lane.b32.xlu0 %v1011, 64
    %v1014 = vpop.permute.xlu0 %1013
    %v1016 = vmul.f32 %v999, %v1014
    %1018 = vrot.lane.b32.xlu0 %v1016, 32
    %v1019 = vpop.permute.xlu0 %1018
    %1021 = vst.msk [vmem:[#allocation3] sm:$0xf] %vm528, %v1019
    %v1022 = vsel %vm230, %v1019, 0
    %1024 = vmatpush.msra.mxu0 0.0
    %1025 = vmatpush.msra.mxu0 0.0
    %1026 = vmatpush.msra.mxu0 0.0
    %1027 = vmatpush.msra.mxu0 0.0
    %1028 = vmatpush.msra.mxu0 0.0
    %1029 = vmatpush.msra.mxu0 0.0
    %1030 = vmatpush.msra.mxu0 0.0
    %1031 = vmatpush.msra.mxu0 0.0
    %1032 = vmatpush.msra.mxu0 0.0
    %1033 = vmatpush.msra.mxu0 0.0
    %1034 = vmatpush.msra.mxu0 0.0
    %1035 = vmatpush.msra.mxu0 0.0
    %1036 = vmatpush.msra.mxu0 %v975
    %1037 = vmatpush.msra.mxu0 %v974
    %1038 = vmatpush.msra.mxu0 %v973
    %1039 = vmatpush.msra.mxu0 %v972
    %1040 = vmatmul.f32.gmra.mxu0 %v1022
    %v1041 = vpop.f32.mrf.mxu0
    %v1042 = vadd.f32 0.0, %v1041
    %1043 = vdwg.mxu0
    %v1045 = vrot.slane %v1042, 4
    %v1047 = vadd.f32 %v956, %v1045
    %v1048 = vtanh.pop %v1047
    %v1049 = vmul.f32 %v1048, %v500
    %v1050 = vadd.f32 %v1049, %v504
    %v1052 = vrot.slane %v1010, 4
    %v1054 = vmul.f32 %v1050, %v1052
    %1056 = vrot.lane.b32.xlu0 %v1050, 64
    %v1057 = vpop.permute.xlu0 %1056
    %v1059 = vmul.f32 %v1050, %v1057
    %1061 = vrot.lane.b32.xlu0 %v1059, 32
    %v1062 = vpop.permute.xlu0 %1061
    %v1064 = vadd.f32 %v1054, %v1062
    %v1065 = vtanh.pop %v1064
    %1067 = vrot.lane.b32.xlu0 %v1065, 64
    %v1068 = vpop.permute.xlu0 %1067
    %v1070 = vmul.f32 %v1050, %v1068
    %1072 = vrot.lane.b32.xlu0 %v1070, 32
    %v1073 = vpop.permute.xlu0 %1072
    %vm1075 = vcmask 261124
    %1076 = vst.msk [vmem:[#allocation3] sm:$0xf0] %vm1075, %v1073
    %v1077 = vrot.slane %v1070, 4
    %1078 = vrot.lane.b32.xlu0 %v1077, 32
    %v1079 = vpop.permute.xlu0 %1078
    %v1080 = vsel %vm230, %v1079, 0
    %1082 = vmatpush.msra.mxu0 0.0
    %1083 = vmatpush.msra.mxu0 0.0
    %1084 = vmatpush.msra.mxu0 0.0
    %1085 = vmatpush.msra.mxu0 0.0
    %1086 = vmatpush.msra.mxu0 0.0
    %1087 = vmatpush.msra.mxu0 0.0
    %1088 = vmatpush.msra.mxu0 0.0
    %1089 = vmatpush.msra.mxu0 0.0
    %1090 = vmatpush.msra.mxu0 0.0
    %1091 = vmatpush.msra.mxu0 0.0
    %1092 = vmatpush.msra.mxu0 0.0
    %1093 = vmatpush.msra.mxu0 0.0
    %1094 = vmatpush.msra.mxu0 %v975
    %1095 = vmatpush.msra.mxu0 %v974
    %1096 = vmatpush.msra.mxu0 %v973
    %1097 = vmatpush.msra.mxu0 %v972
    %1098 = vmatmul.f32.gmra.mxu0 %v1080
    %v1099 = vpop.f32.mrf.mxu0
    %v1100 = vadd.f32 0.0, %v1099
    %1101 = vdwg.mxu0
    %v1102 = vadd.f32 %v961, %v1100
    %v1103 = vtanh.pop %v1102
    %v1104 = vmul.f32 %v1103, %v500
    %v1105 = vadd.f32 %v1104, %v504
    %v1107 = vrot.slane %v1064, 4
    %v1109 = vmul.f32 %v1105, %v1107
    %1111 = vrot.lane.b32.xlu0 %v1105, 64
    %v1112 = vpop.permute.xlu0 %1111
    %v1114 = vmul.f32 %v1105, %v1112
    %1116 = vrot.lane.b32.xlu0 %v1114, 32
    %v1117 = vpop.permute.xlu0 %1116
    %v1119 = vadd.f32 %v1109, %v1117
    %v1120 = vtanh.pop %v1119
    %1122 = vrot.lane.b32.xlu0 %v1120, 64
    %v1123 = vpop.permute.xlu0 %1122
    %v1125 = vmul.f32 %v1105, %v1123
    %1127 = vrot.lane.b32.xlu0 %v1125, 32
    %v1128 = vpop.permute.xlu0 %1127
    %1130 = vst.msk [vmem:[#allocation3 + $0x8] sm:$0xf] %vm528, %v1128
    %v1131 = vsel %vm230, %v1128, 0
    %1133 = vmatpush.msra.mxu0 0.0
    %1134 = vmatpush.msra.mxu0 0.0
    %1135 = vmatpush.msra.mxu0 0.0
    %1136 = vmatpush.msra.mxu0 0.0
    %1137 = vmatpush.msra.mxu0 0.0
    %1138 = vmatpush.msra.mxu0 0.0
    %1139 = vmatpush.msra.mxu0 0.0
    %1140 = vmatpush.msra.mxu0 0.0
    %1141 = vmatpush.msra.mxu0 0.0
    %1142 = vmatpush.msra.mxu0 0.0
    %1143 = vmatpush.msra.mxu0 0.0
    %1144 = vmatpush.msra.mxu0 0.0
    %1145 = vmatpush.msra.mxu0 %v975
    %1146 = vmatpush.msra.mxu0 %v974
    %1147 = vmatpush.msra.mxu0 %v973
    %1148 = vmatpush.msra.mxu0 %v972
    %1149 = vmatmul.f32.gmra.mxu0 %v1131
    %v1150 = vpop.f32.mrf.mxu0
    %v1151 = vadd.f32 0.0, %v1150
    %1152 = vdwg.mxu0
    %v1154 = vrot.slane %v1151, 4
    %v1156 = vadd.f32 %v961, %v1154
    %v1157 = vtanh.pop %v1156
    %v1158 = vmul.f32 %v1157, %v500
    %v1159 = vadd.f32 %v1158, %v504
    %v1161 = vrot.slane %v1119, 4
    %v1163 = vmul.f32 %v1159, %v1161
    %1165 = vrot.lane.b32.xlu0 %v1159, 64
    %v1166 = vpop.permute.xlu0 %1165
    %v1168 = vmul.f32 %v1159, %v1166
    %1170 = vrot.lane.b32.xlu0 %v1168, 32
    %v1171 = vpop.permute.xlu0 %1170
    %v1173 = vadd.f32 %v1163, %v1171
    %v1174 = vtanh.pop %v1173
    %1176 = vrot.lane.b32.xlu0 %v1174, 64
    %v1177 = vpop.permute.xlu0 %1176
    %v1179 = vmul.f32 %v1159, %v1177
    %1181 = vrot.lane.b32.xlu0 %v1179, 32
    %v1182 = vpop.permute.xlu0 %1181
    %1184 = vst.msk [vmem:[#allocation3 + $0x8] sm:$0xf0] %vm1075, %v1182
    %v1185 = vrot.slane %v1179, 4
    %1186 = vrot.lane.b32.xlu0 %v1185, 32
    %v1187 = vpop.permute.xlu0 %1186
    %v1188 = vsel %vm230, %v1187, 0
    %1190 = vmatpush.msra.mxu0 0.0
    %1191 = vmatpush.msra.mxu0 0.0
    %1192 = vmatpush.msra.mxu0 0.0
    %1193 = vmatpush.msra.mxu0 0.0
    %1194 = vmatpush.msra.mxu0 0.0
    %1195 = vmatpush.msra.mxu0 0.0
    %1196 = vmatpush.msra.mxu0 0.0
    %1197 = vmatpush.msra.mxu0 0.0
    %1198 = vmatpush.msra.mxu0 0.0
    %1199 = vmatpush.msra.mxu0 0.0
    %1200 = vmatpush.msra.mxu0 0.0
    %1201 = vmatpush.msra.mxu0 0.0
    %1202 = vmatpush.msra.mxu0 %v975
    %1203 = vmatpush.msra.mxu0 %v974
    %1204 = vmatpush.msra.mxu0 %v973
    %1205 = vmatpush.msra.mxu0 %v972
    %1206 = vmatmul.f32.gmra.mxu0 %v1188
    %v1207 = vpop.f32.mrf.mxu0
    %v1208 = vadd.f32 0.0, %v1207
    %1209 = vdwg.mxu0
    %v1210 = vadd.f32 %v966, %v1208
    %v1211 = vtanh.pop %v1210
    %v1212 = vmul.f32 %v1211, %v500
    %v1213 = vadd.f32 %v1212, %v504
    %v1215 = vrot.slane %v1173, 4
    %v1217 = vmul.f32 %v1213, %v1215
    %1219 = vrot.lane.b32.xlu0 %v1213, 64
    %v1220 = vpop.permute.xlu0 %1219
    %v1222 = vmul.f32 %v1213, %v1220
    %1224 = vrot.lane.b32.xlu0 %v1222, 32
    %v1225 = vpop.permute.xlu0 %1224
    %v1227 = vadd.f32 %v1217, %v1225
    %v1228 = vtanh.pop %v1227
    %1230 = vrot.lane.b32.xlu0 %v1228, 64
    %v1231 = vpop.permute.xlu0 %1230
    %v1233 = vmul.f32 %v1213, %v1231
    %1235 = vrot.lane.b32.xlu0 %v1233, 32
    %v1236 = vpop.permute.xlu0 %1235
    %1238 = vst.msk [vmem:[#allocation3 + $0x10] sm:$0xf] %vm528, %v1236
    %v1239 = vsel %vm230, %v1236, 0
    %1241 = vmatpush.msra.mxu0 0.0
    %1242 = vmatpush.msra.mxu0 0.0
    %1243 = vmatpush.msra.mxu0 0.0
    %1244 = vmatpush.msra.mxu0 0.0
    %1245 = vmatpush.msra.mxu0 0.0
    %1246 = vmatpush.msra.mxu0 0.0
    %1247 = vmatpush.msra.mxu0 0.0
    %1248 = vmatpush.msra.mxu0 0.0
    %1249 = vmatpush.msra.mxu0 0.0
    %1250 = vmatpush.msra.mxu0 0.0
    %1251 = vmatpush.msra.mxu0 0.0
    %1252 = vmatpush.msra.mxu0 0.0
    %1253 = vmatpush.msra.mxu0 %v975
    %1254 = vmatpush.msra.mxu0 %v974
    %1255 = vmatpush.msra.mxu0 %v973
    %1256 = vmatpush.msra.mxu0 %v972
    %1257 = vmatmul.f32.gmra.mxu0 %v1239
    %v1258 = vpop.f32.mrf.mxu0
    %v1259 = vadd.f32 0.0, %v1258
    %1260 = vdwg.mxu0
    %v1262 = vrot.slane %v1259, 4
    %v1264 = vadd.f32 %v966, %v1262
    %v1265 = vtanh.pop %v1264
    %v1266 = vmul.f32 %v1265, %v500
    %v1267 = vadd.f32 %v1266, %v504
    %v1269 = vrot.slane %v1227, 4
    %v1271 = vmul.f32 %v1267, %v1269
    %1273 = vrot.lane.b32.xlu0 %v1267, 64
    %v1274 = vpop.permute.xlu0 %1273
    %v1276 = vmul.f32 %v1267, %v1274
    %1278 = vrot.lane.b32.xlu0 %v1276, 32
    %v1279 = vpop.permute.xlu0 %1278
    %v1281 = vadd.f32 %v1271, %v1279
    %v1282 = vtanh.pop %v1281
    %1284 = vrot.lane.b32.xlu0 %v1282, 64
    %v1285 = vpop.permute.xlu0 %1284
    %v1287 = vmul.f32 %v1267, %v1285
    %1289 = vrot.lane.b32.xlu0 %v1287, 32
    %v1290 = vpop.permute.xlu0 %1289
    %1292 = vst.msk [vmem:[#allocation3 + $0x10] sm:$0xf0] %vm1075, %v1290
    %v1293 = vrot.slane %v1287, 4
    %1294 = vrot.lane.b32.xlu0 %v1293, 32
    %v1295 = vpop.permute.xlu0 %1294
    %v1296 = vsel %vm230, %v1295, 0
    %1298 = vmatpush.msra.mxu0 0.0
    %1299 = vmatpush.msra.mxu0 0.0
    %1300 = vmatpush.msra.mxu0 0.0
    %1301 = vmatpush.msra.mxu0 0.0
    %1302 = vmatpush.msra.mxu0 0.0
    %1303 = vmatpush.msra.mxu0 0.0
    %1304 = vmatpush.msra.mxu0 0.0
    %1305 = vmatpush.msra.mxu0 0.0
    %1306 = vmatpush.msra.mxu0 0.0
    %1307 = vmatpush.msra.mxu0 0.0
    %1308 = vmatpush.msra.mxu0 0.0
    %1309 = vmatpush.msra.mxu0 0.0
    %1310 = vmatpush.msra.mxu0 %v975
    %1311 = vmatpush.msra.mxu0 %v974
    %1312 = vmatpush.msra.mxu0 %v973
    %1313 = vmatpush.msra.mxu0 %v972
    %1314 = vmatmul.f32.gmra.mxu0 %v1296
    %v1315 = vpop.f32.mrf.mxu0
    %v1316 = vadd.f32 0.0, %v1315
    %1317 = vdwg.mxu0
    %v1318 = vadd.f32 %v971, %v1316
    %v1319 = vtanh.pop %v1318
    %v1320 = vmul.f32 %v1319, %v500
    %v1321 = vadd.f32 %v1320, %v504
    %v1323 = vrot.slane %v1281, 4
    %v1325 = vmul.f32 %v1321, %v1323
    %1327 = vrot.lane.b32.xlu0 %v1321, 64
    %v1328 = vpop.permute.xlu0 %1327
    %v1330 = vmul.f32 %v1321, %v1328
    %1332 = vrot.lane.b32.xlu0 %v1330, 32
    %v1333 = vpop.permute.xlu0 %1332
    %v1335 = vadd.f32 %v1325, %v1333
    %v1336 = vtanh.pop %v1335
    %1338 = vrot.lane.b32.xlu0 %v1336, 64
    %v1339 = vpop.permute.xlu0 %1338
    %v1341 = vmul.f32 %v1321, %v1339
    %1343 = vrot.lane.b32.xlu0 %v1341, 32
    %v1344 = vpop.permute.xlu0 %1343
    %1346 = vst.msk [vmem:[#allocation3 + $0x18] sm:$0xf] %vm528, %v1344
    %v1347 = vsel %vm230, %v1344, 0
    %1349 = vmatpush.msra.mxu0 0.0
    %1350 = vmatpush.msra.mxu0 0.0
    %1351 = vmatpush.msra.mxu0 0.0
    %1352 = vmatpush.msra.mxu0 0.0
    %1353 = vmatpush.msra.mxu0 0.0
    %1354 = vmatpush.msra.mxu0 0.0
    %1355 = vmatpush.msra.mxu0 0.0
    %1356 = vmatpush.msra.mxu0 0.0
    %1357 = vmatpush.msra.mxu0 0.0
    %1358 = vmatpush.msra.mxu0 0.0
    %1359 = vmatpush.msra.mxu0 0.0
    %1360 = vmatpush.msra.mxu0 0.0
    %1361 = vmatpush.msra.mxu0 %v975
    %1362 = vmatpush.msra.mxu0 %v974
    %1363 = vmatpush.msra.mxu0 %v973
    %1364 = vmatpush.msra.mxu0 %v972
    %1365 = vmatmul.f32.gmra.mxu0 %v1347
    %v1366 = vpop.f32.mrf.mxu0
    %v1367 = vadd.f32 0.0, %v1366
    %1368 = vdwg.mxu0
    %v1370 = vrot.slane %v1367, 4
    %v1372 = vadd.f32 %v971, %v1370
    %v1373 = vtanh.pop %v1372
    %v1374 = vmul.f32 %v1373, %v500
    %v1375 = vadd.f32 %v1374, %v504
    %v1377 = vrot.slane %v1335, 4
    %v1379 = vmul.f32 %v1375, %v1377
    %1381 = vrot.lane.b32.xlu0 %v1375, 64
    %v1382 = vpop.permute.xlu0 %1381
    %v1384 = vmul.f32 %v1375, %v1382
    %1386 = vrot.lane.b32.xlu0 %v1384, 32
    %v1387 = vpop.permute.xlu0 %1386
    %v1389 = vadd.f32 %v1379, %v1387
    %v1390 = vtanh.pop %v1389
    %1392 = vrot.lane.b32.xlu0 %v1390, 64
    %v1393 = vpop.permute.xlu0 %1392
    %v1395 = vmul.f32 %v1375, %v1393
    %1397 = vrot.lane.b32.xlu0 %v1395, 32
    %v1398 = vpop.permute.xlu0 %1397
    %1400 = vst.msk [vmem:[#allocation3 + $0x18] sm:$0xf0] %vm1075, %v1398
    %v1401 = vld [vmem:[#allocation3] sm:$0xff]
    %v1402 = vld [vmem:[#allocation3 + $0x8] sm:$0xff]
    %v1403 = vld [vmem:[#allocation3 + $0x10] sm:$0xff]
    %v1404 = vld [vmem:[#allocation3 + $0x18] sm:$0xff]
    %vm1405 = vcmask 130048
    %v1406 = vsel %vm1405, %v1401, 0.0
    %1407 = vadd.xlane.f32.xlu0 %v1406
    %v1408 = vpop.xlane.xlu0 %1407
    %v1409 = vsel %vm1405, %v1402, 0.0
    %1410 = vadd.xlane.f32.xlu0 %v1409
    %v1411 = vpop.xlane.xlu0 %1410
    %v1412 = vsel %vm1405, %v1403, 0.0
    %1413 = vadd.xlane.f32.xlu0 %v1412
    %v1414 = vpop.xlane.xlu0 %1413
    %v1415 = vsel %vm1405, %v1404, 0.0
    %1416 = vadd.xlane.f32.xlu0 %v1415
    %v1417 = vpop.xlane.xlu0 %1416
    %1422 = vrot.lane.b32.xlu0 %v1401, 112
    %v1423 = vpop.permute.xlu0 %1422
    %1424 = vrot.lane.b32.xlu0 %v1402, 112
    %v1425 = vpop.permute.xlu0 %1424
    %1426 = vrot.lane.b32.xlu0 %v1403, 112
    %v1427 = vpop.permute.xlu0 %1426
    %1428 = vrot.lane.b32.xlu0 %v1404, 112
    %v1429 = vpop.permute.xlu0 %1428
    %v1434 = vsel %vm1405, %v1423, 0.0
    %1435 = vadd.xlane.f32.xlu0 %v1434
    %v1436 = vpop.xlane.xlu0 %1435
    %v1437 = vsel %vm1405, %v1425, 0.0
    %1438 = vadd.xlane.f32.xlu0 %v1437
    %v1439 = vpop.xlane.xlu0 %1438
    %v1440 = vsel %vm1405, %v1427, 0.0
    %1441 = vadd.xlane.f32.xlu0 %v1440
    %v1442 = vpop.xlane.xlu0 %1441
    %v1443 = vsel %vm1405, %v1429, 0.0
    %1444 = vadd.xlane.f32.xlu0 %v1443
    %v1445 = vpop.xlane.xlu0 %1444
    %v1447 = vrot.slane %v1445, 4
    %v1449 = vadd.f32 %v1408, %v1447
    %v1450 = vmul.f32 %v1449, 0.03125
    %vm1451 = vcmask 3072
    %1452 = vst.msk [vmem:[#allocation19] sm:$0xf] %vm1451, %v1450
    %1454 = vrot.lane.b32.xlu0 %v1450, 1
    %v1455 = vpop.permute.xlu0 %1454
    %vm1457 = vcmask 15372
    %1458 = vst.msk [vmem:[#allocation19 - $0x4] sm:$0xf0] %vm1457, %v1455
    %v1460 = vrot.slane %v1442, 4
    %v1462 = vadd.f32 %v1411, %v1460
    %v1463 = vmul.f32 %v1462, 0.03125
    %1465 = vrot.lane.b32.xlu0 %v1463, 2
    %v1466 = vpop.permute.xlu0 %1465
    %vm1468 = vcmask 19472
    %1469 = vst.msk [vmem:[#allocation19] sm:$0xf] %vm1468, %v1466
    %1470 = vrot.lane.b32.xlu0 %v1463, 3
    %v1471 = vpop.permute.xlu0 %1470
    %vm1473 = vcmask 31772
    %1474 = vst.msk [vmem:[#allocation19 - $0x4] sm:$0xf0] %vm1473, %v1471
    %v1476 = vrot.slane %v1439, 4
    %v1478 = vadd.f32 %v1414, %v1476
    %v1479 = vmul.f32 %v1478, 0.03125
    %1481 = vrot.lane.b32.xlu0 %v1479, 4
    %v1482 = vpop.permute.xlu0 %1481
    %vm1484 = vcmask 35872
    %1485 = vst.msk [vmem:[#allocation19] sm:$0xf] %vm1484, %v1482
    %1486 = vrot.lane.b32.xlu0 %v1479, 5
    %v1487 = vpop.permute.xlu0 %1486
    %vm1489 = vcmask 48172
    %1490 = vst.msk [vmem:[#allocation19 - $0x4] sm:$0xf0] %vm1489, %v1487
    %v1492 = vrot.slane %v1436, 4
    %v1494 = vadd.f32 %v1417, %v1492
    %v1495 = vmul.f32 %v1494, 0.03125
    %1497 = vrot.lane.b32.xlu0 %v1495, 6
    %v1498 = vpop.permute.xlu0 %1497
    %vm1500 = vcmask 52272
    %1501 = vst.msk [vmem:[#allocation19] sm:$0xf] %vm1500, %v1498
    %1502 = vrot.lane.b32.xlu0 %v1495, 7
    %v1503 = vpop.permute.xlu0 %1502
    %vm1505 = vcmask 64572
    %1506 = vst.msk [vmem:[#allocation19 - $0x4] sm:$0xf0] %vm1505, %v1503
    // Predicated region
    $region94: #{tpu_custom_call.1} parent=1 // pred_check
      _
    $region95: #{tpu_custom_call.1} parent=1 // pred_check_branch
      %1508 = sbr.rel (0) target = $region97
    $region96: #{tpu_custom_call.1} parent=1 // pred_region
      %1510 = vsyncadd [#allocation6], 0
      %s1512 = sshll.u32 [#allocation19], 4
      %s1513 = int_to_ptr.vmem [resolvable:$true] %s1512
      %s1514 = sshll.u32 %s14, 4
      %s1515 = int_to_ptr.hbm [resolvable:$true] %s1514
      %1517 = dma.vmem_to_hbm [thread:$0]  %s1513, 64, %s1515, [#allocation6]
    $region97: #{tpu_custom_call.1} parent=1 // pred_fallthru
      _
    // Predicated region
    $region98: #{tpu_custom_call.1} parent=1 // pred_check
      _
    $region99: #{tpu_custom_call.1} parent=1 // pred_check_branch
      %1519 = sbr.rel (0) target = $region101
    $region100: #{tpu_custom_call.1} parent=1 // pred_region
      %1521 = dma.done [#allocation6], 64
    $region101: #{tpu_custom_call.1} parent=1 // pred_fallthru
      _
    %1522 = vsyncpa [#allocation5], 1
    %1523 = vsyncpa [#allocation8], 1
    %1524 = vsyncpa [#allocation11], 1
    %1525 = vsyncpa [#allocation14], 1
    %1526 = vsyncpa [#allocation17], 1
    %1527 = vsyncpa [#allocation6], 1

</llo_original>
